<compile_context>
chip_gen: v7x
topology: tpu7x:2x2x1
jax: 0.10.0
libtpu: 0.0.40
codegen_flags: <defaults>
</compile_context>

<pallas_src>
import math

import jax
import jax.numpy as jnp
from jax import lax
from jax.experimental import pallas as pl
from jax.experimental.pallas import tpu as pltpu


THRESH = 1.0


def _round_up(x, m):
    return (x + m - 1) // m * m


def _spike_rnn_if_block_kernel(xs_ref, wd_ref, wr_ref, b_ref, mem0_ref, spike0_ref,
                               mem_out_ref, spike_out_ref, mem_sc, spike_sc):
    """One grid step = TT time steps. State (mem f32, spike bf16) carried in VMEM scratch."""
    tb = pl.program_id(0)
    tt = xs_ref.shape[0]  # static time-block size

    # Load initial neuron state into resident scratch on the first block.
    @pl.when(tb == 0)
    def _():
        mem_sc[...] = mem0_ref[...]
        spike_sc[...] = spike0_ref[...]

    def step(i, carry):
        mem, spike = carry                      # mem: f32, spike: compute dtype (0/1)
        x_t = xs_ref[i]                          # (B_pad, K_pad), compute dtype
        # Dense + recurrent: two MXU matmuls, f32 accumulation, pre-summed &
        # pre-broadcast bias.
        d_input = (jnp.dot(x_t, wd_ref[...], preferred_element_type=jnp.float32)
                   + jnp.dot(spike, wr_ref[...], preferred_element_type=jnp.float32)
                   + b_ref[...])
        # IF dynamics in f32: hard reset where the previous step fired, integrate, fire.
        mem_new = jnp.where(spike > 0, 0.0, mem) + d_input
        spike_new = (mem_new > THRESH).astype(spike.dtype)
        mem_out_ref[i] = mem_new.astype(mem_out_ref.dtype)
        spike_out_ref[i] = spike_new
        return mem_new, spike_new

    mem_f, spike_f = lax.fori_loop(0, tt, step, (mem_sc[...], spike_sc[...]),
                                   unroll=True)
    mem_sc[...] = mem_f
    spike_sc[...] = spike_f


def spike_rnn_if_sequence(xs, mem0, spike0, w_dense, b_dense, w_rec, b_rec,
                          *, time_block=8, compute_dtype=jnp.bfloat16,
                          mem_out_dtype=jnp.float32):
    """Run T steps of spike_rnn_if.forward in a single pallas_call.

    xs:       [T, B, D_in]   input spikes (0/1)
    mem0:     [B, D_out]     initial membrane potential
    spike0:   [B, D_out]     initial spikes (0/1)
    w_dense:  [D_in, D_out]  (== torch dense.weight.T)      b_dense: [D_out]
    w_rec:    [D_out, D_out] (== torch recurrent.weight.T)  b_rec:   [D_out]
    returns (mem_seq, spike_seq): both [T, B, D_out] float32.
    """
    T, B, D_in = xs.shape
    D_out = mem0.shape[-1]
    B_pad = _round_up(B, 8)
    K_pad = _round_up(D_in, 128)
    D_pad = _round_up(D_out, 128)
    TT = max(1, min(time_block, T))
    T_pad = _round_up(T, TT)
    f32 = jnp.float32
    cdt = compute_dtype

    # ---- One-time padding / packing / casting in the wrapper (not per step). ----
    # Spikes are binary, so the compute-dtype (bf16) cast is exact.
    xs_p = (jnp.zeros((T_pad, B_pad, K_pad), cdt)
            .at[:T, :B, :D_in].set(xs.astype(cdt)))
    wd_p = (jnp.zeros((K_pad, D_pad), f32)
            .at[:D_in, :D_out].set(w_dense.astype(f32)).astype(cdt))
    wr_p = (jnp.zeros((D_pad, D_pad), f32)
            .at[:D_out, :D_out].set(w_rec.astype(f32)).astype(cdt))
    # Pre-summed, pre-broadcast bias: per-step epilogue is a plain aligned add.
    b_p = (jnp.zeros((B_pad, D_pad), f32)
           .at[:, :D_out].set(jnp.broadcast_to((b_dense + b_rec).astype(f32),
                                               (B_pad, D_out))))
    mem0_p = jnp.zeros((B_pad, D_pad), f32).at[:B, :D_out].set(mem0.astype(f32))
    spike0_p = (jnp.zeros((B_pad, D_pad), cdt)
                .at[:B, :D_out].set(spike0.astype(cdt)))

    # ---- Explicit VMEM budget (double-buffered streams + resident constants). ----
    isz = jnp.dtype(cdt).itemsize
    msz = jnp.dtype(mem_out_dtype).itemsize
    vmem_est = (2 * TT * B_pad * K_pad * isz                 # xs blocks
                + 2 * (K_pad + D_pad) * D_pad * isz          # Wd + Wr
                + 2 * B_pad * D_pad * (4 + 4 + isz)          # bias, mem0, spike0
                + 2 * TT * B_pad * D_pad * (msz + isz)       # output blocks
                + B_pad * D_pad * (4 + isz))                 # state scratch
    vmem_limit = int(min(max(2 * vmem_est, 16 << 20), 100 << 20))

    grid_spec = pltpu.PrefetchScalarGridSpec(
        num_scalar_prefetch=0,
        grid=(T_pad // TT,),
        in_specs=[
            pl.BlockSpec((TT, B_pad, K_pad), lambda t: (t, 0, 0)),   # xs time-block
            pl.BlockSpec((K_pad, D_pad), lambda t: (0, 0)),          # W_dense (resident)
            pl.BlockSpec((D_pad, D_pad), lambda t: (0, 0)),          # W_rec   (resident)
            pl.BlockSpec((B_pad, D_pad), lambda t: (0, 0)),          # bias    (resident)
            pl.BlockSpec((B_pad, D_pad), lambda t: (0, 0)),          # mem0
            pl.BlockSpec((B_pad, D_pad), lambda t: (0, 0)),          # spike0
        ],
        out_specs=(
            pl.BlockSpec((TT, B_pad, D_pad), lambda t: (t, 0, 0)),   # mem per step
            pl.BlockSpec((TT, B_pad, D_pad), lambda t: (t, 0, 0)),   # spike per step
        ),
        scratch_shapes=[
            pltpu.VMEM((B_pad, D_pad), f32),   # mem state carry (f32)
            pltpu.VMEM((B_pad, D_pad), cdt),   # spike state carry (bf16, 0/1 exact)
        ],
    )

    mem_seq, spike_seq = pl.pallas_call(
        _spike_rnn_if_block_kernel,
        out_shape=(jax.ShapeDtypeStruct((T_pad, B_pad, D_pad), mem_out_dtype),
                   jax.ShapeDtypeStruct((T_pad, B_pad, D_pad), cdt)),
        grid_spec=grid_spec,
        compiler_params=pltpu.CompilerParams(
            dimension_semantics=("arbitrary",),     # sequential recurrence over T
            vmem_limit_bytes=vmem_limit),
    )(xs_p, wd_p, wr_p, b_p, mem0_p, spike0_p)

    return (mem_seq[:T, :B, :D_out].astype(f32),
            spike_seq[:T, :B, :D_out].astype(f32))


def spike_rnn_if_forward(input_spike, mem, spike, w_dense, b_dense, w_rec, b_rec):
    """Single forward step (matches the PyTorch module's forward signature)."""
    mem_seq, spike_seq = spike_rnn_if_sequence(
        input_spike[None], mem, spike, w_dense, b_dense, w_rec, b_rec, time_block=1)
    return mem_seq[0], spike_seq[0]


def _torch_linear_init(key, fan_in, fan_out):
    """Deterministic init matching torch.nn.Linear defaults (uniform +-1/sqrt(fan_in))."""
    kw, kb = jax.random.split(key)
    bound = 1.0 / math.sqrt(fan_in)
    w = jax.random.uniform(kw, (fan_in, fan_out), jnp.float32, -bound, bound)
    b = jax.random.uniform(kb, (fan_out,), jnp.float32, -bound, bound)
    return w, b


if __name__ == "__main__":
    key = jax.random.PRNGKey(0)
    k_x, k_d, k_r = jax.random.split(key, 3)

    batch = 2
    input_dim = 16
    output_dim = 32
    seq_len = 16          # 2 time-blocks of 8 -> exercises state carry across grid steps

    # Binary spike inputs (forward does input_spike.float()).
    xs = (jax.random.uniform(k_x, (seq_len, batch, input_dim)) > 0.5).astype(jnp.float32)

    # set_neuron_state(batch_size): zero mem / spike.
    mem0 = jnp.zeros((batch, output_dim), jnp.float32)
    spike0 = jnp.zeros((batch, output_dim), jnp.float32)

    # Parameters (deterministic, torch-Linear-style init).
    w_dense, b_dense = _torch_linear_init(k_d, input_dim, output_dim)
    w_rec, b_rec = _torch_linear_init(k_r, output_dim, output_dim)

    mem_seq, spike_seq = spike_rnn_if_sequence(
        xs, mem0, spike0, w_dense, b_dense, w_rec, b_rec, time_block=8)
    jax.block_until_ready((mem_seq, spike_seq))

    # Pure-JAX reference with the same bf16-rounded weights (binary operands make
    # the bf16 matmul exact up to f32 accumulation order).
    wd = w_dense.astype(jnp.bfloat16).astype(jnp.float32)
    wr = w_rec.astype(jnp.bfloat16).astype(jnp.float32)
    bsum = b_dense + b_rec
    mem, spike = mem0, spike0
    for t in range(seq_len):
        d_input = xs[t] @ wd + spike @ wr + bsum
        mem = mem * (1.0 - spike) + d_input
        spike = (mem > THRESH).astype(jnp.float32)
        assert jnp.allclose(mem_seq[t], mem, atol=1e-4), f"mem mismatch at t={t}"
        assert jnp.array_equal(spike_seq[t], spike), f"spike mismatch at t={t}"

    # Single-step path (the module's forward) must agree with step 0.
    mem1, spike1 = spike_rnn_if_forward(
        xs[0], mem0, spike0, w_dense, b_dense, w_rec, b_rec)
    jax.block_until_ready((mem1, spike1))
    assert jnp.allclose(mem1, mem_seq[0], atol=1e-5), "single-step mem mismatch"
    assert jnp.array_equal(spike1, spike_seq[0]), "single-step spike mismatch"

    print("KERNEL_OK")
</pallas_src>

<mosaic_0001>
module attributes {stable_mosaic.version = 11 : i64} {
  func.func @_spike_rnn_if_block_kernel(%arg0: i32, %arg1: memref<8x8x128xbf16, #tpu.memory_space<vmem>>, %arg2: memref<128x128xbf16, #tpu.memory_space<vmem>>, %arg3: memref<128x128xbf16, #tpu.memory_space<vmem>>, %arg4: memref<8x128xf32, #tpu.memory_space<vmem>>, %arg5: memref<8x128xf32, #tpu.memory_space<vmem>>, %arg6: memref<8x128xbf16, #tpu.memory_space<vmem>>, %arg7: memref<8x8x128xf32, #tpu.memory_space<vmem>>, %arg8: memref<8x8x128xbf16, #tpu.memory_space<vmem>>, %arg9: memref<8x128xf32, #tpu.memory_space<vmem>>, %arg10: memref<8x128xbf16, #tpu.memory_space<vmem>>) attributes {dimension_semantics = [#tpu.dimension_semantics<arbitrary>], iteration_bounds = array<i64: 2>, scalar_prefetch = 0 : i64, scratch_operands = 2 : i64, tpu.core_type = #tpu.core_type<tc>, window_params = [{transform_indices = @transform_0, window_bounds = array<i64: 8, 8, 128>}, {pipeline_mode = #tpu.pipeline_mode<synchronous>, transform_indices = @transform_1, window_bounds = array<i64: 128, 128>}, {pipeline_mode = #tpu.pipeline_mode<synchronous>, transform_indices = @transform_2, window_bounds = array<i64: 128, 128>}, {pipeline_mode = #tpu.pipeline_mode<synchronous>, transform_indices = @transform_3, window_bounds = array<i64: 8, 128>}, {pipeline_mode = #tpu.pipeline_mode<synchronous>, transform_indices = @transform_4, window_bounds = array<i64: 8, 128>}, {pipeline_mode = #tpu.pipeline_mode<synchronous>, transform_indices = @transform_5, window_bounds = array<i64: 8, 128>}, {transform_indices = @transform_6, window_bounds = array<i64: 8, 8, 128>}, {transform_indices = @transform_7, window_bounds = array<i64: 8, 8, 128>}]} {
    %c0_i32 = arith.constant 0 : i32
    %0 = arith.cmpi eq, %arg0, %c0_i32 : i32
    %1 = arith.extui %0 : i1 to i32
    %c0_i32_0 = arith.constant 0 : i32
    %2 = arith.cmpi ne, %1, %c0_i32_0 : i32
    scf.if %2 {
      %c0_144 = arith.constant 0 : index
      %c0_145 = arith.constant 0 : index
      %231 = vector.load %arg5[%c0_144, %c0_145] : memref<8x128xf32, #tpu.memory_space<vmem>>, vector<8x128xf32>
      %c0_146 = arith.constant 0 : index
      %c0_147 = arith.constant 0 : index
      %232 = vector.load %arg9[%c0_146, %c0_147] : memref<8x128xf32, #tpu.memory_space<vmem>>, vector<8x128xf32>
      tpu.vector_store %arg9[%c0_146, %c0_147], %231 {strides = array<i32>} : memref<8x128xf32, #tpu.memory_space<vmem>>, vector<8x128xf32>,
      %c0_148 = arith.constant 0 : index
      %c0_149 = arith.constant 0 : index
      %233 = vector.load %arg6[%c0_148, %c0_149] : memref<8x128xbf16, #tpu.memory_space<vmem>>, vector<8x128xbf16>
      %c0_150 = arith.constant 0 : index
      %c0_151 = arith.constant 0 : index
      %234 = vector.load %arg10[%c0_150, %c0_151] : memref<8x128xbf16, #tpu.memory_space<vmem>>, vector<8x128xbf16>
      tpu.vector_store %arg10[%c0_150, %c0_151], %233 {strides = array<i32>} : memref<8x128xbf16, #tpu.memory_space<vmem>>, vector<8x128xbf16>,
    } else {
    }
    %c0 = arith.constant 0 : index
    %c0_1 = arith.constant 0 : index
    %3 = vector.load %arg9[%c0, %c0_1] : memref<8x128xf32, #tpu.memory_space<vmem>>, vector<8x128xf32>
    %c0_2 = arith.constant 0 : index
    %c0_3 = arith.constant 0 : index
    %4 = vector.load %arg10[%c0_2, %c0_3] : memref<8x128xbf16, #tpu.memory_space<vmem>>, vector<8x128xbf16>
    %c0_i32_4 = arith.constant 0 : i32
    %5 = arith.index_cast %c0_i32_4 : i32 to index
    %c0_5 = arith.constant 0 : index
    %c0_6 = arith.constant 0 : index
    %6 = vector.load %arg1[%5, %c0_5, %c0_6] : memref<8x8x128xbf16, #tpu.memory_space<vmem>>, vector<1x8x128xbf16>
    %7 = vector.shape_cast %6 : vector<1x8x128xbf16> to vector<8x128xbf16>
    %c0_7 = arith.constant 0 : index
    %c0_8 = arith.constant 0 : index
    %8 = vector.load %arg2[%c0_7, %c0_8] : memref<128x128xbf16, #tpu.memory_space<vmem>>, vector<128x128xbf16>
    %cst = arith.constant dense<0.000000e+00> : vector<8x128xf32>
    %9 = tpu.matmul %7, %8, %cst {dimension_numbers = #tpu.dot_dimension_numbers<[1], [0], [0], [1], [0, 0, 1, 1], [], []>} : vector<8x128xbf16>, vector<128x128xbf16>, vector<8x128xf32> -> vector<8x128xf32>
    %c0_9 = arith.constant 0 : index
    %c0_10 = arith.constant 0 : index
    %10 = vector.load %arg3[%c0_9, %c0_10] : memref<128x128xbf16, #tpu.memory_space<vmem>>, vector<128x128xbf16>
    %cst_11 = arith.constant dense<0.000000e+00> : vector<8x128xf32>
    %11 = tpu.matmul %4, %10, %cst_11 {dimension_numbers = #tpu.dot_dimension_numbers<[1], [0], [0], [1], [0, 0, 1, 1], [], []>} : vector<8x128xbf16>, vector<128x128xbf16>, vector<8x128xf32> -> vector<8x128xf32>
    %12 = arith.addf %9, %11 : vector<8x128xf32>
    %c0_12 = arith.constant 0 : index
    %c0_13 = arith.constant 0 : index
    %13 = vector.load %arg4[%c0_12, %c0_13] : memref<8x128xf32, #tpu.memory_space<vmem>>, vector<8x128xf32>
    %14 = arith.addf %12, %13 : vector<8x128xf32>
    %cst_14 = arith.constant 0.000000e+00 : bf16
    %15 = vector.broadcast %cst_14 : bf16 to vector<8x128xbf16>
    %16 = arith.cmpf ogt, %4, %15 : vector<8x128xbf16>
    %cst_15 = arith.constant 0.000000e+00 : f32
    %17 = vector.broadcast %cst_15 : f32 to vector<8x128xf32>
    %18 = arith.select %16, %17, %3 : vector<8x128xi1>, vector<8x128xf32>
    %19 = arith.addf %18, %14 : vector<8x128xf32>
    %cst_16 = arith.constant 1.000000e+00 : f32
    %20 = vector.broadcast %cst_16 : f32 to vector<8x128xf32>
    %21 = arith.cmpf ogt, %19, %20 : vector<8x128xf32>
    %22 = arith.extui %21 : vector<8x128xi1> to vector<8x128xi32>
    %23 = arith.sitofp %22 : vector<8x128xi32> to vector<8x128xf32>
    %24 = arith.truncf %23 : vector<8x128xf32> to vector<8x128xbf16>
    %25 = arith.index_cast %c0_i32_4 : i32 to index
    %c0_17 = arith.constant 0 : index
    %c0_18 = arith.constant 0 : index
    %26 = vector.load %arg7[%25, %c0_17, %c0_18] : memref<8x8x128xf32, #tpu.memory_space<vmem>>, vector<1x8x128xf32>
    %27 = vector.shape_cast %26 : vector<1x8x128xf32> to vector<8x128xf32>
    %28 = vector.shape_cast %19 : vector<8x128xf32> to vector<1x8x128xf32>
    tpu.vector_store %arg7[%25, %c0_17, %c0_18], %28 {strides = array<i32>} : memref<8x8x128xf32, #tpu.memory_space<vmem>>, vector<1x8x128xf32>,
    %29 = arith.index_cast %c0_i32_4 : i32 to index
    %c0_19 = arith.constant 0 : index
    %c0_20 = arith.constant 0 : index
    %30 = vector.load %arg8[%29, %c0_19, %c0_20] : memref<8x8x128xbf16, #tpu.memory_space<vmem>>, vector<1x8x128xbf16>
    %31 = vector.shape_cast %30 : vector<1x8x128xbf16> to vector<8x128xbf16>
    %32 = vector.shape_cast %24 : vector<8x128xbf16> to vector<1x8x128xbf16>
    tpu.vector_store %arg8[%29, %c0_19, %c0_20], %32 {strides = array<i32>} : memref<8x8x128xbf16, #tpu.memory_space<vmem>>, vector<1x8x128xbf16>,
    %c1_i32 = arith.constant 1 : i32
    %33 = arith.index_cast %c1_i32 : i32 to index
    %c0_21 = arith.constant 0 : index
    %c0_22 = arith.constant 0 : index
    %34 = vector.load %arg1[%33, %c0_21, %c0_22] : memref<8x8x128xbf16, #tpu.memory_space<vmem>>, vector<1x8x128xbf16>
    %35 = vector.shape_cast %34 : vector<1x8x128xbf16> to vector<8x128xbf16>
    %c0_23 = arith.constant 0 : index
    %c0_24 = arith.constant 0 : index
    %36 = vector.load %arg2[%c0_23, %c0_24] : memref<128x128xbf16, #tpu.memory_space<vmem>>, vector<128x128xbf16>
    %cst_25 = arith.constant dense<0.000000e+00> : vector<8x128xf32>
    %37 = tpu.matmul %35, %36, %cst_25 {dimension_numbers = #tpu.dot_dimension_numbers<[1], [0], [0], [1], [0, 0, 1, 1], [], []>} : vector<8x128xbf16>, vector<128x128xbf16>, vector<8x128xf32> -> vector<8x128xf32>
    %c0_26 = arith.constant 0 : index
    %c0_27 = arith.constant 0 : index
    %38 = vector.load %arg3[%c0_26, %c0_27] : memref<128x128xbf16, #tpu.memory_space<vmem>>, vector<128x128xbf16>
    %cst_28 = arith.constant dense<0.000000e+00> : vector<8x128xf32>
    %39 = tpu.matmul %24, %38, %cst_28 {dimension_numbers = #tpu.dot_dimension_numbers<[1], [0], [0], [1], [0, 0, 1, 1], [], []>} : vector<8x128xbf16>, vector<128x128xbf16>, vector<8x128xf32> -> vector<8x128xf32>
    %40 = arith.addf %37, %39 : vector<8x128xf32>
    %c0_29 = arith.constant 0 : index
    %c0_30 = arith.constant 0 : index
    %41 = vector.load %arg4[%c0_29, %c0_30] : memref<8x128xf32, #tpu.memory_space<vmem>>, vector<8x128xf32>
    %42 = arith.addf %40, %41 : vector<8x128xf32>
    %cst_31 = arith.constant 0.000000e+00 : bf16
    %43 = vector.broadcast %cst_31 : bf16 to vector<8x128xbf16>
    %44 = arith.cmpf ogt, %24, %43 : vector<8x128xbf16>
    %cst_32 = arith.constant 0.000000e+00 : f32
    %45 = vector.broadcast %cst_32 : f32 to vector<8x128xf32>
    %46 = arith.select %44, %45, %19 : vector<8x128xi1>, vector<8x128xf32>
    %47 = arith.addf %46, %42 : vector<8x128xf32>
    %cst_33 = arith.constant 1.000000e+00 : f32
    %48 = vector.broadcast %cst_33 : f32 to vector<8x128xf32>
    %49 = arith.cmpf ogt, %47, %48 : vector<8x128xf32>
    %50 = arith.extui %49 : vector<8x128xi1> to vector<8x128xi32>
    %51 = arith.sitofp %50 : vector<8x128xi32> to vector<8x128xf32>
    %52 = arith.truncf %51 : vector<8x128xf32> to vector<8x128xbf16>
    %53 = arith.index_cast %c1_i32 : i32 to index
    %c0_34 = arith.constant 0 : index
    %c0_35 = arith.constant 0 : index
    %54 = vector.load %arg7[%53, %c0_34, %c0_35] : memref<8x8x128xf32, #tpu.memory_space<vmem>>, vector<1x8x128xf32>
    %55 = vector.shape_cast %54 : vector<1x8x128xf32> to vector<8x128xf32>
    %56 = vector.shape_cast %47 : vector<8x128xf32> to vector<1x8x128xf32>
    tpu.vector_store %arg7[%53, %c0_34, %c0_35], %56 {strides = array<i32>} : memref<8x8x128xf32, #tpu.memory_space<vmem>>, vector<1x8x128xf32>,
    %57 = arith.index_cast %c1_i32 : i32 to index
    %c0_36 = arith.constant 0 : index
    %c0_37 = arith.constant 0 : index
    %58 = vector.load %arg8[%57, %c0_36, %c0_37] : memref<8x8x128xbf16, #tpu.memory_space<vmem>>, vector<1x8x128xbf16>
    %59 = vector.shape_cast %58 : vector<1x8x128xbf16> to vector<8x128xbf16>
    %60 = vector.shape_cast %52 : vector<8x128xbf16> to vector<1x8x128xbf16>
    tpu.vector_store %arg8[%57, %c0_36, %c0_37], %60 {strides = array<i32>} : memref<8x8x128xbf16, #tpu.memory_space<vmem>>, vector<1x8x128xbf16>,
    %c2_i32 = arith.constant 2 : i32
    %61 = arith.index_cast %c2_i32 : i32 to index
    %c0_38 = arith.constant 0 : index
    %c0_39 = arith.constant 0 : index
    %62 = vector.load %arg1[%61, %c0_38, %c0_39] : memref<8x8x128xbf16, #tpu.memory_space<vmem>>, vector<1x8x128xbf16>
    %63 = vector.shape_cast %62 : vector<1x8x128xbf16> to vector<8x128xbf16>
    %c0_40 = arith.constant 0 : index
    %c0_41 = arith.constant 0 : index
    %64 = vector.load %arg2[%c0_40, %c0_41] : memref<128x128xbf16, #tpu.memory_space<vmem>>, vector<128x128xbf16>
    %cst_42 = arith.constant dense<0.000000e+00> : vector<8x128xf32>
    %65 = tpu.matmul %63, %64, %cst_42 {dimension_numbers = #tpu.dot_dimension_numbers<[1], [0], [0], [1], [0, 0, 1, 1], [], []>} : vector<8x128xbf16>, vector<128x128xbf16>, vector<8x128xf32> -> vector<8x128xf32>
    %c0_43 = arith.constant 0 : index
    %c0_44 = arith.constant 0 : index
    %66 = vector.load %arg3[%c0_43, %c0_44] : memref<128x128xbf16, #tpu.memory_space<vmem>>, vector<128x128xbf16>
    %cst_45 = arith.constant dense<0.000000e+00> : vector<8x128xf32>
    %67 = tpu.matmul %52, %66, %cst_45 {dimension_numbers = #tpu.dot_dimension_numbers<[1], [0], [0], [1], [0, 0, 1, 1], [], []>} : vector<8x128xbf16>, vector<128x128xbf16>, vector<8x128xf32> -> vector<8x128xf32>
    %68 = arith.addf %65, %67 : vector<8x128xf32>
    %c0_46 = arith.constant 0 : index
    %c0_47 = arith.constant 0 : index
    %69 = vector.load %arg4[%c0_46, %c0_47] : memref<8x128xf32, #tpu.memory_space<vmem>>, vector<8x128xf32>
    %70 = arith.addf %68, %69 : vector<8x128xf32>
    %cst_48 = arith.constant 0.000000e+00 : bf16
    %71 = vector.broadcast %cst_48 : bf16 to vector<8x128xbf16>
    %72 = arith.cmpf ogt, %52, %71 : vector<8x128xbf16>
    %cst_49 = arith.constant 0.000000e+00 : f32
    %73 = vector.broadcast %cst_49 : f32 to vector<8x128xf32>
    %74 = arith.select %72, %73, %47 : vector<8x128xi1>, vector<8x128xf32>
    %75 = arith.addf %74, %70 : vector<8x128xf32>
    %cst_50 = arith.constant 1.000000e+00 : f32
    %76 = vector.broadcast %cst_50 : f32 to vector<8x128xf32>
    %77 = arith.cmpf ogt, %75, %76 : vector<8x128xf32>
    %78 = arith.extui %77 : vector<8x128xi1> to vector<8x128xi32>
    %79 = arith.sitofp %78 : vector<8x128xi32> to vector<8x128xf32>
    %80 = arith.truncf %79 : vector<8x128xf32> to vector<8x128xbf16>
    %81 = arith.index_cast %c2_i32 : i32 to index
    %c0_51 = arith.constant 0 : index
    %c0_52 = arith.constant 0 : index
    %82 = vector.load %arg7[%81, %c0_51, %c0_52] : memref<8x8x128xf32, #tpu.memory_space<vmem>>, vector<1x8x128xf32>
    %83 = vector.shape_cast %82 : vector<1x8x128xf32> to vector<8x128xf32>
    %84 = vector.shape_cast %75 : vector<8x128xf32> to vector<1x8x128xf32>
    tpu.vector_store %arg7[%81, %c0_51, %c0_52], %84 {strides = array<i32>} : memref<8x8x128xf32, #tpu.memory_space<vmem>>, vector<1x8x128xf32>,
    %85 = arith.index_cast %c2_i32 : i32 to index
    %c0_53 = arith.constant 0 : index
    %c0_54 = arith.constant 0 : index
    %86 = vector.load %arg8[%85, %c0_53, %c0_54] : memref<8x8x128xbf16, #tpu.memory_space<vmem>>, vector<1x8x128xbf16>
    %87 = vector.shape_cast %86 : vector<1x8x128xbf16> to vector<8x128xbf16>
    %88 = vector.shape_cast %80 : vector<8x128xbf16> to vector<1x8x128xbf16>
    tpu.vector_store %arg8[%85, %c0_53, %c0_54], %88 {strides = array<i32>} : memref<8x8x128xbf16, #tpu.memory_space<vmem>>, vector<1x8x128xbf16>,
    %c3_i32 = arith.constant 3 : i32
    %89 = arith.index_cast %c3_i32 : i32 to index
    %c0_55 = arith.constant 0 : index
    %c0_56 = arith.constant 0 : index
    %90 = vector.load %arg1[%89, %c0_55, %c0_56] : memref<8x8x128xbf16, #tpu.memory_space<vmem>>, vector<1x8x128xbf16>
    %91 = vector.shape_cast %90 : vector<1x8x128xbf16> to vector<8x128xbf16>
    %c0_57 = arith.constant 0 : index
    %c0_58 = arith.constant 0 : index
    %92 = vector.load %arg2[%c0_57, %c0_58] : memref<128x128xbf16, #tpu.memory_space<vmem>>, vector<128x128xbf16>
    %cst_59 = arith.constant dense<0.000000e+00> : vector<8x128xf32>
    %93 = tpu.matmul %91, %92, %cst_59 {dimension_numbers = #tpu.dot_dimension_numbers<[1], [0], [0], [1], [0, 0, 1, 1], [], []>} : vector<8x128xbf16>, vector<128x128xbf16>, vector<8x128xf32> -> vector<8x128xf32>
    %c0_60 = arith.constant 0 : index
    %c0_61 = arith.constant 0 : index
    %94 = vector.load %arg3[%c0_60, %c0_61] : memref<128x128xbf16, #tpu.memory_space<vmem>>, vector<128x128xbf16>
    %cst_62 = arith.constant dense<0.000000e+00> : vector<8x128xf32>
    %95 = tpu.matmul %80, %94, %cst_62 {dimension_numbers = #tpu.dot_dimension_numbers<[1], [0], [0], [1], [0, 0, 1, 1], [], []>} : vector<8x128xbf16>, vector<128x128xbf16>, vector<8x128xf32> -> vector<8x128xf32>
    %96 = arith.addf %93, %95 : vector<8x128xf32>
    %c0_63 = arith.constant 0 : index
    %c0_64 = arith.constant 0 : index
    %97 = vector.load %arg4[%c0_63, %c0_64] : memref<8x128xf32, #tpu.memory_space<vmem>>, vector<8x128xf32>
    %98 = arith.addf %96, %97 : vector<8x128xf32>
    %cst_65 = arith.constant 0.000000e+00 : bf16
    %99 = vector.broadcast %cst_65 : bf16 to vector<8x128xbf16>
    %100 = arith.cmpf ogt, %80, %99 : vector<8x128xbf16>
    %cst_66 = arith.constant 0.000000e+00 : f32
    %101 = vector.broadcast %cst_66 : f32 to vector<8x128xf32>
    %102 = arith.select %100, %101, %75 : vector<8x128xi1>, vector<8x128xf32>
    %103 = arith.addf %102, %98 : vector<8x128xf32>
    %cst_67 = arith.constant 1.000000e+00 : f32
    %104 = vector.broadcast %cst_67 : f32 to vector<8x128xf32>
    %105 = arith.cmpf ogt, %103, %104 : vector<8x128xf32>
    %106 = arith.extui %105 : vector<8x128xi1> to vector<8x128xi32>
    %107 = arith.sitofp %106 : vector<8x128xi32> to vector<8x128xf32>
    %108 = arith.truncf %107 : vector<8x128xf32> to vector<8x128xbf16>
    %109 = arith.index_cast %c3_i32 : i32 to index
    %c0_68 = arith.constant 0 : index
    %c0_69 = arith.constant 0 : index
    %110 = vector.load %arg7[%109, %c0_68, %c0_69] : memref<8x8x128xf32, #tpu.memory_space<vmem>>, vector<1x8x128xf32>
    %111 = vector.shape_cast %110 : vector<1x8x128xf32> to vector<8x128xf32>
    %112 = vector.shape_cast %103 : vector<8x128xf32> to vector<1x8x128xf32>
    tpu.vector_store %arg7[%109, %c0_68, %c0_69], %112 {strides = array<i32>} : memref<8x8x128xf32, #tpu.memory_space<vmem>>, vector<1x8x128xf32>,
    %113 = arith.index_cast %c3_i32 : i32 to index
    %c0_70 = arith.constant 0 : index
    %c0_71 = arith.constant 0 : index
    %114 = vector.load %arg8[%113, %c0_70, %c0_71] : memref<8x8x128xbf16, #tpu.memory_space<vmem>>, vector<1x8x128xbf16>
    %115 = vector.shape_cast %114 : vector<1x8x128xbf16> to vector<8x128xbf16>
    %116 = vector.shape_cast %108 : vector<8x128xbf16> to vector<1x8x128xbf16>
    tpu.vector_store %arg8[%113, %c0_70, %c0_71], %116 {strides = array<i32>} : memref<8x8x128xbf16, #tpu.memory_space<vmem>>, vector<1x8x128xbf16>,
    %c4_i32 = arith.constant 4 : i32
    %117 = arith.index_cast %c4_i32 : i32 to index
    %c0_72 = arith.constant 0 : index
    %c0_73 = arith.constant 0 : index
    %118 = vector.load %arg1[%117, %c0_72, %c0_73] : memref<8x8x128xbf16, #tpu.memory_space<vmem>>, vector<1x8x128xbf16>
    %119 = vector.shape_cast %118 : vector<1x8x128xbf16> to vector<8x128xbf16>
    %c0_74 = arith.constant 0 : index
    %c0_75 = arith.constant 0 : index
    %120 = vector.load %arg2[%c0_74, %c0_75] : memref<128x128xbf16, #tpu.memory_space<vmem>>, vector<128x128xbf16>
    %cst_76 = arith.constant dense<0.000000e+00> : vector<8x128xf32>
    %121 = tpu.matmul %119, %120, %cst_76 {dimension_numbers = #tpu.dot_dimension_numbers<[1], [0], [0], [1], [0, 0, 1, 1], [], []>} : vector<8x128xbf16>, vector<128x128xbf16>, vector<8x128xf32> -> vector<8x128xf32>
    %c0_77 = arith.constant 0 : index
    %c0_78 = arith.constant 0 : index
    %122 = vector.load %arg3[%c0_77, %c0_78] : memref<128x128xbf16, #tpu.memory_space<vmem>>, vector<128x128xbf16>
    %cst_79 = arith.constant dense<0.000000e+00> : vector<8x128xf32>
    %123 = tpu.matmul %108, %122, %cst_79 {dimension_numbers = #tpu.dot_dimension_numbers<[1], [0], [0], [1], [0, 0, 1, 1], [], []>} : vector<8x128xbf16>, vector<128x128xbf16>, vector<8x128xf32> -> vector<8x128xf32>
    %124 = arith.addf %121, %123 : vector<8x128xf32>
    %c0_80 = arith.constant 0 : index
    %c0_81 = arith.constant 0 : index
    %125 = vector.load %arg4[%c0_80, %c0_81] : memref<8x128xf32, #tpu.memory_space<vmem>>, vector<8x128xf32>
    %126 = arith.addf %124, %125 : vector<8x128xf32>
    %cst_82 = arith.constant 0.000000e+00 : bf16
    %127 = vector.broadcast %cst_82 : bf16 to vector<8x128xbf16>
    %128 = arith.cmpf ogt, %108, %127 : vector<8x128xbf16>
    %cst_83 = arith.constant 0.000000e+00 : f32
    %129 = vector.broadcast %cst_83 : f32 to vector<8x128xf32>
    %130 = arith.select %128, %129, %103 : vector<8x128xi1>, vector<8x128xf32>
    %131 = arith.addf %130, %126 : vector<8x128xf32>
    %cst_84 = arith.constant 1.000000e+00 : f32
    %132 = vector.broadcast %cst_84 : f32 to vector<8x128xf32>
    %133 = arith.cmpf ogt, %131, %132 : vector<8x128xf32>
    %134 = arith.extui %133 : vector<8x128xi1> to vector<8x128xi32>
    %135 = arith.sitofp %134 : vector<8x128xi32> to vector<8x128xf32>
    %136 = arith.truncf %135 : vector<8x128xf32> to vector<8x128xbf16>
    %137 = arith.index_cast %c4_i32 : i32 to index
    %c0_85 = arith.constant 0 : index
    %c0_86 = arith.constant 0 : index
    %138 = vector.load %arg7[%137, %c0_85, %c0_86] : memref<8x8x128xf32, #tpu.memory_space<vmem>>, vector<1x8x128xf32>
    %139 = vector.shape_cast %138 : vector<1x8x128xf32> to vector<8x128xf32>
    %140 = vector.shape_cast %131 : vector<8x128xf32> to vector<1x8x128xf32>
    tpu.vector_store %arg7[%137, %c0_85, %c0_86], %140 {strides = array<i32>} : memref<8x8x128xf32, #tpu.memory_space<vmem>>, vector<1x8x128xf32>,
    %141 = arith.index_cast %c4_i32 : i32 to index
    %c0_87 = arith.constant 0 : index
    %c0_88 = arith.constant 0 : index
    %142 = vector.load %arg8[%141, %c0_87, %c0_88] : memref<8x8x128xbf16, #tpu.memory_space<vmem>>, vector<1x8x128xbf16>
    %143 = vector.shape_cast %142 : vector<1x8x128xbf16> to vector<8x128xbf16>
    %144 = vector.shape_cast %136 : vector<8x128xbf16> to vector<1x8x128xbf16>
    tpu.vector_store %arg8[%141, %c0_87, %c0_88], %144 {strides = array<i32>} : memref<8x8x128xbf16, #tpu.memory_space<vmem>>, vector<1x8x128xbf16>,
    %c5_i32 = arith.constant 5 : i32
    %145 = arith.index_cast %c5_i32 : i32 to index
    %c0_89 = arith.constant 0 : index
    %c0_90 = arith.constant 0 : index
    %146 = vector.load %arg1[%145, %c0_89, %c0_90] : memref<8x8x128xbf16, #tpu.memory_space<vmem>>, vector<1x8x128xbf16>
    %147 = vector.shape_cast %146 : vector<1x8x128xbf16> to vector<8x128xbf16>
    %c0_91 = arith.constant 0 : index
    %c0_92 = arith.constant 0 : index
    %148 = vector.load %arg2[%c0_91, %c0_92] : memref<128x128xbf16, #tpu.memory_space<vmem>>, vector<128x128xbf16>
    %cst_93 = arith.constant dense<0.000000e+00> : vector<8x128xf32>
    %149 = tpu.matmul %147, %148, %cst_93 {dimension_numbers = #tpu.dot_dimension_numbers<[1], [0], [0], [1], [0, 0, 1, 1], [], []>} : vector<8x128xbf16>, vector<128x128xbf16>, vector<8x128xf32> -> vector<8x128xf32>
    %c0_94 = arith.constant 0 : index
    %c0_95 = arith.constant 0 : index
    %150 = vector.load %arg3[%c0_94, %c0_95] : memref<128x128xbf16, #tpu.memory_space<vmem>>, vector<128x128xbf16>
    %cst_96 = arith.constant dense<0.000000e+00> : vector<8x128xf32>
    %151 = tpu.matmul %136, %150, %cst_96 {dimension_numbers = #tpu.dot_dimension_numbers<[1], [0], [0], [1], [0, 0, 1, 1], [], []>} : vector<8x128xbf16>, vector<128x128xbf16>, vector<8x128xf32> -> vector<8x128xf32>
    %152 = arith.addf %149, %151 : vector<8x128xf32>
    %c0_97 = arith.constant 0 : index
    %c0_98 = arith.constant 0 : index
    %153 = vector.load %arg4[%c0_97, %c0_98] : memref<8x128xf32, #tpu.memory_space<vmem>>, vector<8x128xf32>
    %154 = arith.addf %152, %153 : vector<8x128xf32>
    %cst_99 = arith.constant 0.000000e+00 : bf16
    %155 = vector.broadcast %cst_99 : bf16 to vector<8x128xbf16>
    %156 = arith.cmpf ogt, %136, %155 : vector<8x128xbf16>
    %cst_100 = arith.constant 0.000000e+00 : f32
    %157 = vector.broadcast %cst_100 : f32 to vector<8x128xf32>
    %158 = arith.select %156, %157, %131 : vector<8x128xi1>, vector<8x128xf32>
    %159 = arith.addf %158, %154 : vector<8x128xf32>
    %cst_101 = arith.constant 1.000000e+00 : f32
    %160 = vector.broadcast %cst_101 : f32 to vector<8x128xf32>
    %161 = arith.cmpf ogt, %159, %160 : vector<8x128xf32>
    %162 = arith.extui %161 : vector<8x128xi1> to vector<8x128xi32>
    %163 = arith.sitofp %162 : vector<8x128xi32> to vector<8x128xf32>
    %164 = arith.truncf %163 : vector<8x128xf32> to vector<8x128xbf16>
    %165 = arith.index_cast %c5_i32 : i32 to index
    %c0_102 = arith.constant 0 : index
    %c0_103 = arith.constant 0 : index
    %166 = vector.load %arg7[%165, %c0_102, %c0_103] : memref<8x8x128xf32, #tpu.memory_space<vmem>>, vector<1x8x128xf32>
    %167 = vector.shape_cast %166 : vector<1x8x128xf32> to vector<8x128xf32>
    %168 = vector.shape_cast %159 : vector<8x128xf32> to vector<1x8x128xf32>
    tpu.vector_store %arg7[%165, %c0_102, %c0_103], %168 {strides = array<i32>} : memref<8x8x128xf32, #tpu.memory_space<vmem>>, vector<1x8x128xf32>,
    %169 = arith.index_cast %c5_i32 : i32 to index
    %c0_104 = arith.constant 0 : index
    %c0_105 = arith.constant 0 : index
    %170 = vector.load %arg8[%169, %c0_104, %c0_105] : memref<8x8x128xbf16, #tpu.memory_space<vmem>>, vector<1x8x128xbf16>
    %171 = vector.shape_cast %170 : vector<1x8x128xbf16> to vector<8x128xbf16>
    %172 = vector.shape_cast %164 : vector<8x128xbf16> to vector<1x8x128xbf16>
    tpu.vector_store %arg8[%169, %c0_104, %c0_105], %172 {strides = array<i32>} : memref<8x8x128xbf16, #tpu.memory_space<vmem>>, vector<1x8x128xbf16>,
    %c6_i32 = arith.constant 6 : i32
    %173 = arith.index_cast %c6_i32 : i32 to index
    %c0_106 = arith.constant 0 : index
    %c0_107 = arith.constant 0 : index
    %174 = vector.load %arg1[%173, %c0_106, %c0_107] : memref<8x8x128xbf16, #tpu.memory_space<vmem>>, vector<1x8x128xbf16>
    %175 = vector.shape_cast %174 : vector<1x8x128xbf16> to vector<8x128xbf16>
    %c0_108 = arith.constant 0 : index
    %c0_109 = arith.constant 0 : index
    %176 = vector.load %arg2[%c0_108, %c0_109] : memref<128x128xbf16, #tpu.memory_space<vmem>>, vector<128x128xbf16>
    %cst_110 = arith.constant dense<0.000000e+00> : vector<8x128xf32>
    %177 = tpu.matmul %175, %176, %cst_110 {dimension_numbers = #tpu.dot_dimension_numbers<[1], [0], [0], [1], [0, 0, 1, 1], [], []>} : vector<8x128xbf16>, vector<128x128xbf16>, vector<8x128xf32> -> vector<8x128xf32>
    %c0_111 = arith.constant 0 : index
    %c0_112 = arith.constant 0 : index
    %178 = vector.load %arg3[%c0_111, %c0_112] : memref<128x128xbf16, #tpu.memory_space<vmem>>, vector<128x128xbf16>
    %cst_113 = arith.constant dense<0.000000e+00> : vector<8x128xf32>
    %179 = tpu.matmul %164, %178, %cst_113 {dimension_numbers = #tpu.dot_dimension_numbers<[1], [0], [0], [1], [0, 0, 1, 1], [], []>} : vector<8x128xbf16>, vector<128x128xbf16>, vector<8x128xf32> -> vector<8x128xf32>
    %180 = arith.addf %177, %179 : vector<8x128xf32>
    %c0_114 = arith.constant 0 : index
    %c0_115 = arith.constant 0 : index
    %181 = vector.load %arg4[%c0_114, %c0_115] : memref<8x128xf32, #tpu.memory_space<vmem>>, vector<8x128xf32>
    %182 = arith.addf %180, %181 : vector<8x128xf32>
    %cst_116 = arith.constant 0.000000e+00 : bf16
    %183 = vector.broadcast %cst_116 : bf16 to vector<8x128xbf16>
    %184 = arith.cmpf ogt, %164, %183 : vector<8x128xbf16>
    %cst_117 = arith.constant 0.000000e+00 : f32
    %185 = vector.broadcast %cst_117 : f32 to vector<8x128xf32>
    %186 = arith.select %184, %185, %159 : vector<8x128xi1>, vector<8x128xf32>
    %187 = arith.addf %186, %182 : vector<8x128xf32>
    %cst_118 = arith.constant 1.000000e+00 : f32
    %188 = vector.broadcast %cst_118 : f32 to vector<8x128xf32>
    %189 = arith.cmpf ogt, %187, %188 : vector<8x128xf32>
    %190 = arith.extui %189 : vector<8x128xi1> to vector<8x128xi32>
    %191 = arith.sitofp %190 : vector<8x128xi32> to vector<8x128xf32>
    %192 = arith.truncf %191 : vector<8x128xf32> to vector<8x128xbf16>
    %193 = arith.index_cast %c6_i32 : i32 to index
    %c0_119 = arith.constant 0 : index
    %c0_120 = arith.constant 0 : index
    %194 = vector.load %arg7[%193, %c0_119, %c0_120] : memref<8x8x128xf32, #tpu.memory_space<vmem>>, vector<1x8x128xf32>
    %195 = vector.shape_cast %194 : vector<1x8x128xf32> to vector<8x128xf32>
    %196 = vector.shape_cast %187 : vector<8x128xf32> to vector<1x8x128xf32>
    tpu.vector_store %arg7[%193, %c0_119, %c0_120], %196 {strides = array<i32>} : memref<8x8x128xf32, #tpu.memory_space<vmem>>, vector<1x8x128xf32>,
    %197 = arith.index_cast %c6_i32 : i32 to index
    %c0_121 = arith.constant 0 : index
    %c0_122 = arith.constant 0 : index
    %198 = vector.load %arg8[%197, %c0_121, %c0_122] : memref<8x8x128xbf16, #tpu.memory_space<vmem>>, vector<1x8x128xbf16>
    %199 = vector.shape_cast %198 : vector<1x8x128xbf16> to vector<8x128xbf16>
    %200 = vector.shape_cast %192 : vector<8x128xbf16> to vector<1x8x128xbf16>
    tpu.vector_store %arg8[%197, %c0_121, %c0_122], %200 {strides = array<i32>} : memref<8x8x128xbf16, #tpu.memory_space<vmem>>, vector<1x8x128xbf16>,
    %c7_i32 = arith.constant 7 : i32
    %201 = arith.index_cast %c7_i32 : i32 to index
    %c0_123 = arith.constant 0 : index
    %c0_124 = arith.constant 0 : index
    %202 = vector.load %arg1[%201, %c0_123, %c0_124] : memref<8x8x128xbf16, #tpu.memory_space<vmem>>, vector<1x8x128xbf16>
    %203 = vector.shape_cast %202 : vector<1x8x128xbf16> to vector<8x128xbf16>
    %c0_125 = arith.constant 0 : index
    %c0_126 = arith.constant 0 : index
    %204 = vector.load %arg2[%c0_125, %c0_126] : memref<128x128xbf16, #tpu.memory_space<vmem>>, vector<128x128xbf16>
    %cst_127 = arith.constant dense<0.000000e+00> : vector<8x128xf32>
    %205 = tpu.matmul %203, %204, %cst_127 {dimension_numbers = #tpu.dot_dimension_numbers<[1], [0], [0], [1], [0, 0, 1, 1], [], []>} : vector<8x128xbf16>, vector<128x128xbf16>, vector<8x128xf32> -> vector<8x128xf32>
    %c0_128 = arith.constant 0 : index
    %c0_129 = arith.constant 0 : index
    %206 = vector.load %arg3[%c0_128, %c0_129] : memref<128x128xbf16, #tpu.memory_space<vmem>>, vector<128x128xbf16>
    %cst_130 = arith.constant dense<0.000000e+00> : vector<8x128xf32>
    %207 = tpu.matmul %192, %206, %cst_130 {dimension_numbers = #tpu.dot_dimension_numbers<[1], [0], [0], [1], [0, 0, 1, 1], [], []>} : vector<8x128xbf16>, vector<128x128xbf16>, vector<8x128xf32> -> vector<8x128xf32>
    %208 = arith.addf %205, %207 : vector<8x128xf32>
    %c0_131 = arith.constant 0 : index
    %c0_132 = arith.constant 0 : index
    %209 = vector.load %arg4[%c0_131, %c0_132] : memref<8x128xf32, #tpu.memory_space<vmem>>, vector<8x128xf32>
    %210 = arith.addf %208, %209 : vector<8x128xf32>
    %cst_133 = arith.constant 0.000000e+00 : bf16
    %211 = vector.broadcast %cst_133 : bf16 to vector<8x128xbf16>
    %212 = arith.cmpf ogt, %192, %211 : vector<8x128xbf16>
    %cst_134 = arith.constant 0.000000e+00 : f32
    %213 = vector.broadcast %cst_134 : f32 to vector<8x128xf32>
    %214 = arith.select %212, %213, %187 : vector<8x128xi1>, vector<8x128xf32>
    %215 = arith.addf %214, %210 : vector<8x128xf32>
    %cst_135 = arith.constant 1.000000e+00 : f32
    %216 = vector.broadcast %cst_135 : f32 to vector<8x128xf32>
    %217 = arith.cmpf ogt, %215, %216 : vector<8x128xf32>
    %218 = arith.extui %217 : vector<8x128xi1> to vector<8x128xi32>
    %219 = arith.sitofp %218 : vector<8x128xi32> to vector<8x128xf32>
    %220 = arith.truncf %219 : vector<8x128xf32> to vector<8x128xbf16>
    %221 = arith.index_cast %c7_i32 : i32 to index
    %c0_136 = arith.constant 0 : index
    %c0_137 = arith.constant 0 : index
    %222 = vector.load %arg7[%221, %c0_136, %c0_137] : memref<8x8x128xf32, #tpu.memory_space<vmem>>, vector<1x8x128xf32>
    %223 = vector.shape_cast %222 : vector<1x8x128xf32> to vector<8x128xf32>
    %224 = vector.shape_cast %215 : vector<8x128xf32> to vector<1x8x128xf32>
    tpu.vector_store %arg7[%221, %c0_136, %c0_137], %224 {strides = array<i32>} : memref<8x8x128xf32, #tpu.memory_space<vmem>>, vector<1x8x128xf32>,
    %225 = arith.index_cast %c7_i32 : i32 to index
    %c0_138 = arith.constant 0 : index
    %c0_139 = arith.constant 0 : index
    %226 = vector.load %arg8[%225, %c0_138, %c0_139] : memref<8x8x128xbf16, #tpu.memory_space<vmem>>, vector<1x8x128xbf16>
    %227 = vector.shape_cast %226 : vector<1x8x128xbf16> to vector<8x128xbf16>
    %228 = vector.shape_cast %220 : vector<8x128xbf16> to vector<1x8x128xbf16>
    tpu.vector_store %arg8[%225, %c0_138, %c0_139], %228 {strides = array<i32>} : memref<8x8x128xbf16, #tpu.memory_space<vmem>>, vector<1x8x128xbf16>,
    %c8_i32 = arith.constant 8 : i32
    %c0_140 = arith.constant 0 : index
    %c0_141 = arith.constant 0 : index
    %229 = vector.load %arg9[%c0_140, %c0_141] : memref<8x128xf32, #tpu.memory_space<vmem>>, vector<8x128xf32>
    tpu.vector_store %arg9[%c0_140, %c0_141], %215 {strides = array<i32>} : memref<8x128xf32, #tpu.memory_space<vmem>>, vector<8x128xf32>,
    %c0_142 = arith.constant 0 : index
    %c0_143 = arith.constant 0 : index
    %230 = vector.load %arg10[%c0_142, %c0_143] : memref<8x128xbf16, #tpu.memory_space<vmem>>, vector<8x128xbf16>
    tpu.vector_store %arg10[%c0_142, %c0_143], %220 {strides = array<i32>} : memref<8x128xbf16, #tpu.memory_space<vmem>>, vector<8x128xbf16>,
    return
  }
  func.func @transform_0(%arg0: i32) -> (i32, i32, i32) {
    %c0_i32 = arith.constant 0 : i32
    %c0_i32_0 = arith.constant 0 : i32
    %c0_i32_1 = arith.constant 0 : i32
    return %arg0, %c0_i32, %c0_i32_0 : i32, i32, i32
  }
  func.func @transform_1(%arg0: i32) -> (i32, i32) {
    %c0_i32 = arith.constant 0 : i32
    %c0_i32_0 = arith.constant 0 : i32
    %c0_i32_1 = arith.constant 0 : i32
    return %c0_i32, %c0_i32_0 : i32, i32
  }
  func.func @transform_2(%arg0: i32) -> (i32, i32) {
    %c0_i32 = arith.constant 0 : i32
    %c0_i32_0 = arith.constant 0 : i32
    %c0_i32_1 = arith.constant 0 : i32
    return %c0_i32, %c0_i32_0 : i32, i32
  }
  func.func @transform_3(%arg0: i32) -> (i32, i32) {
    %c0_i32 = arith.constant 0 : i32
    %c0_i32_0 = arith.constant 0 : i32
    %c0_i32_1 = arith.constant 0 : i32
    return %c0_i32, %c0_i32_0 : i32, i32
  }
  func.func @transform_4(%arg0: i32) -> (i32, i32) {
    %c0_i32 = arith.constant 0 : i32
    %c0_i32_0 = arith.constant 0 : i32
    %c0_i32_1 = arith.constant 0 : i32
    return %c0_i32, %c0_i32_0 : i32, i32
  }
  func.func @transform_5(%arg0: i32) -> (i32, i32) {
    %c0_i32 = arith.constant 0 : i32
    %c0_i32_0 = arith.constant 0 : i32
    %c0_i32_1 = arith.constant 0 : i32
    return %c0_i32, %c0_i32_0 : i32, i32
  }
  func.func @transform_6(%arg0: i32) -> (i32, i32, i32) {
    %c0_i32 = arith.constant 0 : i32
    %c0_i32_0 = arith.constant 0 : i32
    %c0_i32_1 = arith.constant 0 : i32
    return %arg0, %c0_i32, %c0_i32_0 : i32, i32, i32
  }
  func.func @transform_7(%arg0: i32) -> (i32, i32, i32) {
    %c0_i32 = arith.constant 0 : i32
    %c0_i32_0 = arith.constant 0 : i32
    %c0_i32_1 = arith.constant 0 : i32
    return %arg0, %c0_i32, %c0_i32_0 : i32, i32, i32
  }
}

</mosaic_0001>

<llo_original>
// kernel: tpu_custom_call.1
$region0: #{tpu_custom_call.1}
  #allocation0 [shape = 'u32[]', space=smem, size = 0x4, offset = 0x4, fixed_abs, tag = 'smem constant byte address 0x4 - core index']
  #allocation1 [shape = 'u32[144,128]{1,0:T(1,128)}', space=vmem, size = 0x12000, scoped, tag = 'internal scratch']
  #allocation2 [shape = 'f32[8,128]{1,0:T(8,128)}', space=vmem, size = 0x1000, scoped, tag = 'scratch operand']
  #allocation3 [shape = 'bf16[8,128]{1,0:T(8,128)(2,1)}', space=vmem, size = 0x800, scoped, tag = 'scratch operand']
  %s0 = inlined_call_operand.hbm [shape: bf16[16,8,128], index: 0, kind: input, shape index: {}]
  %s1 = inlined_call_operand.hbm [shape: bf16[128,128], index: 1, kind: input, shape index: {}]
  %s2 = inlined_call_operand.hbm [shape: bf16[128,128], index: 2, kind: input, shape index: {}]
  %s3 = inlined_call_operand.vmem [shape: f32[8,128], index: 3, kind: input, shape index: {}]
  %s4 = inlined_call_operand.hbm [shape: f32[8,128], index: 4, kind: input, shape index: {}]
  %s5 = inlined_call_operand.vmem [shape: bf16[8,128], index: 5, kind: input, shape index: {}]
  %s6 = inlined_call_operand.hbm [shape: f32[16,8,128], index: 6, kind: output, shape index: {0}]
  %s7 = inlined_call_operand.hbm [shape: bf16[16,8,128], index: 7, kind: output, shape index: {1}]
  %8 = xla_tuple %s6, %s7
  %s9 = sld [smem:[#allocation0]]
  $region85: #{tpu_custom_call.1} parent=0
    _
  %s11 = ssub.s32 1, %s9
  %s12 = scalar_select 0, %s11, %s9
  $region1: #{tpu_custom_call.1} parent=0
    #allocation4 [shape = 'u8[32768]{0}', space=vmem, size = 0x8000, scoped, tag = 'input window, operand 0']
    #allocation5 [shape = 's32[2]{0}', space=sflag, size = 0x8, scoped, tag = 'scoped memory for tpu_custom_call.1']
    #allocation6 [shape = 's32[2]{0}', space=sflag, size = 0x8, scoped, tag = 'scoped memory for tpu_custom_call.1']
    #allocation7 [shape = 'u8[32768]{0}', space=vmem, size = 0x8000, scoped, tag = 'input window, operand 1, single buffered']
    #allocation8 [shape = 's32[1]{0}', space=sflag, size = 0x4, scoped, tag = 'scoped memory for tpu_custom_call.1']
    #allocation9 [shape = 'u8[32768]{0}', space=vmem, size = 0x8000, scoped, tag = 'input window, operand 2, single buffered']
    #allocation10 [shape = 'u8[4096]{0}', space=vmem, size = 0x1000, scoped, tag = 'input window, operand 4, single buffered']
    #allocation11 [shape = 's32[1]{0}', space=sflag, size = 0x4, scoped, tag = 'scoped memory for tpu_custom_call.1']
    #allocation12 [shape = 'u8[65536]{0}', space=vmem, size = 0x10000, scoped, tag = 'output window, operand 0']
    #allocation13 [shape = 'u8[32768]{0}', space=vmem, size = 0x8000, scoped, tag = 'output window, operand 1']
    #allocation14 [shape = 's32[2]{0}', space=sflag, size = 0x8, scoped, tag = 'scoped memory for tpu_custom_call.1']
    %13 = vsyncpa [#allocation5], 0
    %s14 = scalar_lea.sflag [#allocation5], 1
    %15 = vsyncpa %s14, 0
    %16 = vsyncpa [#allocation8], 0
    %17 = vsyncpa [#allocation11], 0
    %18 = vsyncpa [#allocation6], 0
    %s19 = scalar_lea.sflag [#allocation6], 1
    %20 = vsyncpa %s19, 0
    %21 = vsyncpa [#allocation14], 0
    %s22 = scalar_lea.sflag [#allocation14], 1
    %23 = vsyncpa %s22, 0
    loop: start=0, step=1, limit=4
    $region2: #{tpu_custom_call.1} parent=1 // loop_pre_header
      _
    $region3: #{tpu_custom_call.1} parent=1 // loop_header
      %s25 = sphi 0, %s29
      %p26 = scmp.ge.s32.totalorder %s25, 4
      %s35 = sphi 0, %s37
      %s38 = sphi 0, %s35
      %s39 = sphi 0, %s38
      %s55 = sphi 0, %s39
      %s59 = sphi 0, %s59
      %s61 = sphi 0, %s59
      %s62 = sphi 0, %s61
      %s76 = sphi 0, %s62
      %s80 = sphi 0, %s80
      %s82 = sphi 0, %s80
      %s83 = sphi 0, %s82
      %s97 = sphi 0, %s83
      %s101 = sphi 0, %s101
      %s103 = sphi 0, %s101
      %s104 = sphi 0, %s103
      %s118 = sphi 0, %s104
      %s122 = sphi 0, %s122
      %s124 = sphi 0, %s122
      %s125 = sphi 0, %s124
      %s139 = sphi 0, %s125
      %s143 = sphi 0, %s143
      %s145 = sphi 0, %s143
      %s146 = sphi 0, %s145
      %s160 = sphi 0, %s146
      %s166 = sphi 0, %s168
      %s169 = sphi 0, %s166
      %s170 = sphi 0, %s169
      %s186 = sphi 0, %s170
      %s192 = sphi 0, %s194
      %s195 = sphi 0, %s192
      %s196 = sphi 0, %s195
      %s212 = sphi 0, %s196
    $region4: #{tpu_custom_call.1} parent=1 // loop_header_branch
      %28 = sbr.rel (%p26) target = $region8
    $region5: #{tpu_custom_call.1} parent=1 // loop_body
      %s30 = ssub.s32 %s25, 1
      %s31 = ssub.s32 %s25, 2
      %s32 = sadd.s32 %s25, 1
      %s33 = ssub.s32 %s25, %s32
      %p34 = scmp.eq.s32.totalorder %s33, 0
      %s36 = sadd.s32 %s35, 1
      %s37 = scalar_select %p34, %s35, %s36
      %p40 = pneg %p34
      %p41 = scmp.eq.s32.totalorder %s25, 1
      %p42 = por %p40, %p41
      %p43 = scmp.ne.s32.totalorder %s35, %s38
      %p44 = scmp.eq.s32.totalorder %s25, 0
      %p45 = por %p43, %p44
      %p46 = scmp.ne.s32.totalorder %s35, %s38
      %p47 = scmp.eq.s32.totalorder %s30, 1
      %p48 = por %p46, %p47
      %p49 = scmp.ne.s32.totalorder %s38, %s39
      %p50 = scmp.eq.s32.totalorder %s30, 0
      %p51 = por %p49, %p50
      %p52 = scmp.ne.s32.totalorder %s38, %s39
      %p53 = scmp.eq.s32.totalorder %s31, 1
      %p54 = por %p52, %p53
      %p56 = scmp.ne.s32.totalorder %s39, %s55
      %p57 = scmp.eq.s32.totalorder %s31, 0
      %p58 = por %p56, %p57
      %s60 = sadd.s32 %s59, 1
      %p63 = scmp.eq.s32.totalorder %s25, 1
      %p64 = scmp.ne.s32.totalorder %s59, %s61
      %p65 = scmp.eq.s32.totalorder %s25, 0
      %p66 = por %p64, %p65
      %p67 = scmp.ne.s32.totalorder %s59, %s61
      %p68 = scmp.eq.s32.totalorder %s30, 1
      %p69 = por %p67, %p68
      %p70 = scmp.ne.s32.totalorder %s61, %s62
      %p71 = scmp.eq.s32.totalorder %s30, 0
      %p72 = por %p70, %p71
      %p73 = scmp.ne.s32.totalorder %s61, %s62
      %p74 = scmp.eq.s32.totalorder %s31, 1
      %p75 = por %p73, %p74
      %p77 = scmp.ne.s32.totalorder %s62, %s76
      %p78 = scmp.eq.s32.totalorder %s31, 0
      %p79 = por %p77, %p78
      %s81 = sadd.s32 %s80, 1
      %p84 = scmp.eq.s32.totalorder %s25, 1
      %p85 = scmp.ne.s32.totalorder %s80, %s82
      %p86 = scmp.eq.s32.totalorder %s25, 0
      %p87 = por %p85, %p86
      %p88 = scmp.ne.s32.totalorder %s80, %s82
      %p89 = scmp.eq.s32.totalorder %s30, 1
      %p90 = por %p88, %p89
      %p91 = scmp.ne.s32.totalorder %s82, %s83
      %p92 = scmp.eq.s32.totalorder %s30, 0
      %p93 = por %p91, %p92
      %p94 = scmp.ne.s32.totalorder %s82, %s83
      %p95 = scmp.eq.s32.totalorder %s31, 1
      %p96 = por %p94, %p95
      %p98 = scmp.ne.s32.totalorder %s83, %s97
      %p99 = scmp.eq.s32.totalorder %s31, 0
      %p100 = por %p98, %p99
      %s102 = sadd.s32 %s101, 1
      %p105 = scmp.eq.s32.totalorder %s25, 1
      %p106 = scmp.ne.s32.totalorder %s101, %s103
      %p107 = scmp.eq.s32.totalorder %s25, 0
      %p108 = por %p106, %p107
      %p109 = scmp.ne.s32.totalorder %s101, %s103
      %p110 = scmp.eq.s32.totalorder %s30, 1
      %p111 = por %p109, %p110
      %p112 = scmp.ne.s32.totalorder %s103, %s104
      %p113 = scmp.eq.s32.totalorder %s30, 0
      %p114 = por %p112, %p113
      %p115 = scmp.ne.s32.totalorder %s103, %s104
      %p116 = scmp.eq.s32.totalorder %s31, 1
      %p117 = por %p115, %p116
      %p119 = scmp.ne.s32.totalorder %s104, %s118
      %p120 = scmp.eq.s32.totalorder %s31, 0
      %p121 = por %p119, %p120
      %s123 = sadd.s32 %s122, 1
      %p126 = scmp.eq.s32.totalorder %s25, 1
      %p127 = scmp.ne.s32.totalorder %s122, %s124
      %p128 = scmp.eq.s32.totalorder %s25, 0
      %p129 = por %p127, %p128
      %p130 = scmp.ne.s32.totalorder %s122, %s124
      %p131 = scmp.eq.s32.totalorder %s30, 1
      %p132 = por %p130, %p131
      %p133 = scmp.ne.s32.totalorder %s124, %s125
      %p134 = scmp.eq.s32.totalorder %s30, 0
      %p135 = por %p133, %p134
      %p136 = scmp.ne.s32.totalorder %s124, %s125
      %p137 = scmp.eq.s32.totalorder %s31, 1
      %p138 = por %p136, %p137
      %p140 = scmp.ne.s32.totalorder %s125, %s139
      %p141 = scmp.eq.s32.totalorder %s31, 0
      %p142 = por %p140, %p141
      %s144 = sadd.s32 %s143, 1
      %p147 = scmp.eq.s32.totalorder %s25, 1
      %p148 = scmp.ne.s32.totalorder %s143, %s145
      %p149 = scmp.eq.s32.totalorder %s25, 0
      %p150 = por %p148, %p149
      %p151 = scmp.ne.s32.totalorder %s143, %s145
      %p152 = scmp.eq.s32.totalorder %s30, 1
      %p153 = por %p151, %p152
      %p154 = scmp.ne.s32.totalorder %s145, %s146
      %p155 = scmp.eq.s32.totalorder %s30, 0
      %p156 = por %p154, %p155
      %p157 = scmp.ne.s32.totalorder %s145, %s146
      %p158 = scmp.eq.s32.totalorder %s31, 1
      %p159 = por %p157, %p158
      %p161 = scmp.ne.s32.totalorder %s146, %s160
      %p162 = scmp.eq.s32.totalorder %s31, 0
      %p163 = por %p161, %p162
      %s164 = ssub.s32 %s25, %s32
      %p165 = scmp.eq.s32.totalorder %s164, 0
      %s167 = sadd.s32 %s166, 1
      %s168 = scalar_select %p165, %s166, %s167
      %p171 = pneg %p165
      %p172 = scmp.eq.s32.totalorder %s25, 1
      %p173 = por %p171, %p172
      %p174 = scmp.ne.s32.totalorder %s166, %s169
      %p175 = scmp.eq.s32.totalorder %s25, 0
      %p176 = por %p174, %p175
      %p177 = scmp.ne.s32.totalorder %s166, %s169
      %p178 = scmp.eq.s32.totalorder %s30, 1
      %p179 = por %p177, %p178
      %p180 = scmp.ne.s32.totalorder %s169, %s170
      %p181 = scmp.eq.s32.totalorder %s30, 0
      %p182 = por %p180, %p181
      %p183 = scmp.ne.s32.totalorder %s169, %s170
      %p184 = scmp.eq.s32.totalorder %s31, 1
      %p185 = por %p183, %p184
      %p187 = scmp.ne.s32.totalorder %s170, %s186
      %p188 = scmp.eq.s32.totalorder %s31, 0
      %p189 = por %p187, %p188
      %s190 = ssub.s32 %s25, %s32
      %p191 = scmp.eq.s32.totalorder %s190, 0
      %s193 = sadd.s32 %s192, 1
      %s194 = scalar_select %p191, %s192, %s193
      %p197 = pneg %p191
      %p198 = scmp.eq.s32.totalorder %s25, 1
      %p199 = por %p197, %p198
      %p200 = scmp.ne.s32.totalorder %s192, %s195
      %p201 = scmp.eq.s32.totalorder %s25, 0
      %p202 = por %p200, %p201
      %p203 = scmp.ne.s32.totalorder %s192, %s195
      %p204 = scmp.eq.s32.totalorder %s30, 1
      %p205 = por %p203, %p204
      %p206 = scmp.ne.s32.totalorder %s195, %s196
      %p207 = scmp.eq.s32.totalorder %s30, 0
      %p208 = por %p206, %p207
      %p209 = scmp.ne.s32.totalorder %s195, %s196
      %p210 = scmp.eq.s32.totalorder %s31, 1
      %p211 = por %p209, %p210
      %p213 = scmp.ne.s32.totalorder %s196, %s212
      %p214 = scmp.eq.s32.totalorder %s31, 0
      %p215 = por %p213, %p214
      %p216 = scmp.le.s32.totalorder 1, %s25
      %p217 = scmp.lt.s32.totalorder %s25, 3
      %p218 = pnand %p216, %p217
      %p219 = pneg %p218
      // Predicated region
      $region9: #{tpu_custom_call.1} parent=5 // pred_check
        _
      $region10: #{tpu_custom_call.1} parent=5 // pred_check_branch
        %221 = sbr.rel (%p218) target = $region12
      $region11: #{tpu_custom_call.1} parent=5 // pred_region
        %s222 = ssub.s32 %s25, 1
        // Predicated region
        $region13: #{tpu_custom_call.1} parent=11 // pred_check
          %p223 = pneg %p72
        $region14: #{tpu_custom_call.1} parent=11 // pred_check_branch
          %225 = sbr.rel (%p223) target = $region16
        $region15: #{tpu_custom_call.1} parent=11 // pred_region
          %s227 = ssub.s32 1024, 1024
          %228 = vsyncadd [#allocation8], %s227
          %s229 = sshll.u32 [#allocation7], 4
          %s230 = int_to_ptr.vmem [resolvable:$true] %s229
          %235 = dma.hbm_to_vmem [thread:$0]  %s1, 1024, %s230, [#allocation8], 64, 64, 4
        $region16: #{tpu_custom_call.1} parent=11 // pred_fallthru
          _
        // Predicated region
        $region17: #{tpu_custom_call.1} parent=11 // pred_check
          %p236 = pneg %p93
        $region18: #{tpu_custom_call.1} parent=11 // pred_check_branch
          %238 = sbr.rel (%p236) target = $region20
        $region19: #{tpu_custom_call.1} parent=11 // pred_region
          %s240 = ssub.s32 1024, 1024
          %241 = vsyncadd [#allocation8], %s240
          %s242 = sshll.u32 [#allocation9], 4
          %s243 = int_to_ptr.vmem [resolvable:$true] %s242
          %248 = dma.hbm_to_vmem [thread:$0]  %s2, 1024, %s243, [#allocation8], 64, 64, 4
        $region20: #{tpu_custom_call.1} parent=11 // pred_fallthru
          _
        // Predicated region
        $region21: #{tpu_custom_call.1} parent=11 // pred_check
          %p249 = pneg %p114
        $region22: #{tpu_custom_call.1} parent=11 // pred_check_branch
          %251 = sbr.rel (%p249) target = $region24
        $region23: #{tpu_custom_call.1} parent=11 // pred_region
          _
        $region24: #{tpu_custom_call.1} parent=11 // pred_fallthru
          _
        // Predicated region
        $region25: #{tpu_custom_call.1} parent=11 // pred_check
          %p252 = pneg %p135
        $region26: #{tpu_custom_call.1} parent=11 // pred_check_branch
          %254 = sbr.rel (%p252) target = $region28
        $region27: #{tpu_custom_call.1} parent=11 // pred_region
          %s256 = ssub.s32 128, 128
          %257 = vsyncadd [#allocation11], %s256
          %s259 = sshll.u32 [#allocation10], 4
          %s260 = int_to_ptr.vmem [resolvable:$true] %s259
          %262 = dma.hbm_to_vmem [thread:$0]  %s4, 128, %s260, [#allocation11]
        $region28: #{tpu_custom_call.1} parent=11 // pred_fallthru
          _
        // Predicated region
        $region29: #{tpu_custom_call.1} parent=11 // pred_check
          %p263 = pneg %p156
        $region30: #{tpu_custom_call.1} parent=11 // pred_check_branch
          %265 = sbr.rel (%p263) target = $region32
        $region31: #{tpu_custom_call.1} parent=11 // pred_region
          _
        $region32: #{tpu_custom_call.1} parent=11 // pred_fallthru
          _
      $region12: #{tpu_custom_call.1} parent=5 // pred_fallthru
        _
      %p266 = scmp.lt.s32.totalorder %s25, 2
      // Predicated region
      $region33: #{tpu_custom_call.1} parent=5 // pred_check
        %p267 = pneg %p266
      $region34: #{tpu_custom_call.1} parent=5 // pred_check_branch
        %269 = sbr.rel (%p267) target = $region36
      $region35: #{tpu_custom_call.1} parent=5 // pred_region
        // Predicated region
        $region37: #{tpu_custom_call.1} parent=35 // pred_check
          %p270 = pneg %p45
        $region38: #{tpu_custom_call.1} parent=35 // pred_check_branch
          %272 = sbr.rel (%p270) target = $region40
        $region39: #{tpu_custom_call.1} parent=35 // pred_region
          %s273 = sand.u32 %s35, 1
          %s274 = scalar_lea.sflag [#allocation5], %s273
          %s275 = sand.u32 %s35, 1
          %s276 = smul.addr %s275, 32
          %s277 = scalar_lea.vmem [#allocation4], %s276
          %s278 = smul.u32 8, %s25
          %s280 = ssub.s32 512, 512
          %281 = vsyncadd %s274, %s280
          %s282 = smul.addr %s278, 64
          %s283 = scalar_lea.hbm %s0, %s282
          %s284 = sshll.u32 %s277, 4
          %s285 = int_to_ptr.vmem [resolvable:$true] %s284
          %290 = dma.hbm_to_vmem [thread:$0]  %s283, 512, %s285, %s274, 64, 64, 4
        $region40: #{tpu_custom_call.1} parent=35 // pred_fallthru
          _
      $region36: #{tpu_custom_call.1} parent=5 // pred_fallthru
        _
      %p291 = scmp.le.s32.totalorder 1, %s25
      %p292 = scmp.lt.s32.totalorder %s25, 3
      %p293 = pnand %p291, %p292
      %p294 = pneg %p293
      // Predicated region
      $region41: #{tpu_custom_call.1} parent=5 // pred_check
        _
      $region42: #{tpu_custom_call.1} parent=5 // pred_check_branch
        %296 = sbr.rel (%p293) target = $region44
      $region43: #{tpu_custom_call.1} parent=5 // pred_region
        %s297 = ssub.s32 %s25, 1
        %s298 = sand.u32 %s38, 1
        %s299 = scalar_lea.sflag [#allocation5], %s298
        %s300 = sand.u32 %s38, 1
        %s301 = smul.addr %s300, 32
        %s302 = scalar_lea.vmem [#allocation4], %s301
        // Predicated region
        $region45: #{tpu_custom_call.1} parent=43 // pred_check
          %p303 = pneg %p51
        $region46: #{tpu_custom_call.1} parent=43 // pred_check_branch
          %305 = sbr.rel (%p303) target = $region48
        $region47: #{tpu_custom_call.1} parent=43 // pred_region
          %306 = dma.done %s299, 512
        $region48: #{tpu_custom_call.1} parent=43 // pred_fallthru
          _
        // Predicated region
        $region49: #{tpu_custom_call.1} parent=43 // pred_check
          %p307 = pneg %p72
        $region50: #{tpu_custom_call.1} parent=43 // pred_check_branch
          %309 = sbr.rel (%p307) target = $region52
        $region51: #{tpu_custom_call.1} parent=43 // pred_region
          %310 = dma.done [#allocation8], 1024
        $region52: #{tpu_custom_call.1} parent=43 // pred_fallthru
          _
        // Predicated region
        $region53: #{tpu_custom_call.1} parent=43 // pred_check
          %p311 = pneg %p93
        $region54: #{tpu_custom_call.1} parent=43 // pred_check_branch
          %313 = sbr.rel (%p311) target = $region56
        $region55: #{tpu_custom_call.1} parent=43 // pred_region
          %314 = dma.done [#allocation8], 1024
        $region56: #{tpu_custom_call.1} parent=43 // pred_fallthru
          _
        // Predicated region
        $region57: #{tpu_custom_call.1} parent=43 // pred_check
          %p315 = pneg %p135
        $region58: #{tpu_custom_call.1} parent=43 // pred_check_branch
          %317 = sbr.rel (%p315) target = $region60
        $region59: #{tpu_custom_call.1} parent=43 // pred_region
          %318 = dma.done [#allocation11], 128
        $region60: #{tpu_custom_call.1} parent=43 // pred_fallthru
          _
        %s319 = sand.u32 %s38, 1
        %s320 = scalar_lea.sflag [#allocation5], %s319
        %s321 = sand.u32 %s38, 1
        %s322 = smul.addr %s321, 32
        %s323 = scalar_lea.vmem [#allocation4], %s322
        %p324 = pneg %p51
        %p325 = pneg %p48
        %p326 = pneg %p72
        %p327 = pneg %p69
        %p328 = pneg %p93
        %p329 = pneg %p90
        %p330 = pneg %p114
        %p331 = pneg %p111
        %p332 = pneg %p135
        %p333 = pneg %p132
        %p334 = pneg %p156
        %p335 = pneg %p153
        %p336 = pneg %p182
        %p337 = pneg %p179
        %s338 = sand.u32 %s169, 1
        %s339 = scalar_lea.sflag [#allocation6], %s338
        %s340 = sand.u32 %s169, 1
        %s341 = smul.addr %s340, 64
        %s342 = scalar_lea.vmem [#allocation12], %s341
        %p343 = pneg %p208
        %p344 = pneg %p205
        %s345 = sand.u32 %s195, 1
        %s346 = scalar_lea.sflag [#allocation14], %s345
        %s347 = sand.u32 %s195, 1
        %s348 = smul.addr %s347, 32
        %s349 = scalar_lea.vmem [#allocation13], %s348
        %s350 = smul.u32 8, %s30
        %s351 = smul.u32 8, %s30
        %s352 = smul.u32 8, %s30
        %p356 = scmp.eq.s32.totalorder %s30, 0
        // Predicated region
        $region61: #{tpu_custom_call.1} parent=43 // pred_check
          %p357 = pneg %p356
        $region62: #{tpu_custom_call.1} parent=43 // pred_check_branch
          %359 = sbr.rel (%p357) target = $region64
        $region63: #{tpu_custom_call.1} parent=43 // pred_region
          %v360 = vld [vmem:[#allocation10] sm:$0xff]
          %361 = vst [vmem:[#allocation2] sm:$0xff] %v360
          %v362 = vld [vmem:[%s5] sm:$0xf]
          %363 = vst [vmem:[#allocation3] sm:$0xf] %v362
        $region64: #{tpu_custom_call.1} parent=43 // pred_fallthru
          _
        %v364 = vld [vmem:[#allocation2] sm:$0xff]
        %v365 = vld [vmem:[#allocation3] sm:$0xf]
        %v366 = vld [vmem:[%s302] sm:$0xf]
        %v367 = vld [vmem:[#allocation7] sm:$0xf]
        %v368 = vld [vmem:[#allocation7 + $0x4] sm:$0xf]
        %v369 = vld [vmem:[#allocation7 + $0x8] sm:$0xf]
        %v370 = vld [vmem:[#allocation7 + $0xc] sm:$0xf]
        %v371 = vld [vmem:[#allocation7 + $0x10] sm:$0xf]
        %v372 = vld [vmem:[#allocation7 + $0x14] sm:$0xf]
        %v373 = vld [vmem:[#allocation7 + $0x18] sm:$0xf]
        %v374 = vld [vmem:[#allocation7 + $0x1c] sm:$0xf]
        %v375 = vld [vmem:[#allocation7 + $0x20] sm:$0xf]
        %v376 = vld [vmem:[#allocation7 + $0x24] sm:$0xf]
        %v377 = vld [vmem:[#allocation7 + $0x28] sm:$0xf]
        %v378 = vld [vmem:[#allocation7 + $0x2c] sm:$0xf]
        %v379 = vld [vmem:[#allocation7 + $0x30] sm:$0xf]
        %v380 = vld [vmem:[#allocation7 + $0x34] sm:$0xf]
        %v381 = vld [vmem:[#allocation7 + $0x38] sm:$0xf]
        %v382 = vld [vmem:[#allocation7 + $0x3c] sm:$0xf]
        %v383 = vld [vmem:[#allocation9] sm:$0xf]
        %v384 = vld [vmem:[#allocation9 + $0x4] sm:$0xf]
        %v385 = vld [vmem:[#allocation9 + $0x8] sm:$0xf]
        %v386 = vld [vmem:[#allocation9 + $0xc] sm:$0xf]
        %v387 = vld [vmem:[#allocation9 + $0x10] sm:$0xf]
        %v388 = vld [vmem:[#allocation9 + $0x14] sm:$0xf]
        %v389 = vld [vmem:[#allocation9 + $0x18] sm:$0xf]
        %v390 = vld [vmem:[#allocation9 + $0x1c] sm:$0xf]
        %v391 = vld [vmem:[#allocation9 + $0x20] sm:$0xf]
        %v392 = vld [vmem:[#allocation9 + $0x24] sm:$0xf]
        %v393 = vld [vmem:[#allocation9 + $0x28] sm:$0xf]
        %v394 = vld [vmem:[#allocation9 + $0x2c] sm:$0xf]
        %v395 = vld [vmem:[#allocation9 + $0x30] sm:$0xf]
        %v396 = vld [vmem:[#allocation9 + $0x34] sm:$0xf]
        %v397 = vld [vmem:[#allocation9 + $0x38] sm:$0xf]
        %v398 = vld [vmem:[#allocation9 + $0x3c] sm:$0xf]
        %v415 = vunpack.c.l.b16 %v383
        %v416 = vunpack.c.l.b16 %v384
        %v417 = vunpack.c.l.b16 %v385
        %v418 = vunpack.c.l.b16 %v386
        %v419 = vunpack.c.l.b16 %v387
        %v420 = vunpack.c.l.b16 %v388
        %v421 = vunpack.c.l.b16 %v389
        %v422 = vunpack.c.l.b16 %v390
        %v423 = vunpack.c.l.b16 %v391
        %v424 = vunpack.c.l.b16 %v392
        %v425 = vunpack.c.l.b16 %v393
        %v426 = vunpack.c.l.b16 %v394
        %v427 = vunpack.c.l.b16 %v395
        %v428 = vunpack.c.l.b16 %v396
        %v429 = vunpack.c.l.b16 %v397
        %v430 = vunpack.c.l.b16 %v398
        %v431 = vpack.c.b16 %v416, %v415
        %v432 = vpack.c.b16 %v418, %v417
        %v433 = vpack.c.b16 %v420, %v419
        %v434 = vpack.c.b16 %v422, %v421
        %v435 = vpack.c.b16 %v424, %v423
        %v436 = vpack.c.b16 %v426, %v425
        %v437 = vpack.c.b16 %v428, %v427
        %v438 = vpack.c.b16 %v430, %v429
        %447 = vmatprep.subr.bf16.mxu0 0
        %448 = vmatpush1.bf16.msra.mxu0 %v431
        %449 = vmatprep.subr.bf16.mxu0 0
        %450 = vmatpush1.bf16.msra.mxu0 %v432
        %451 = vmatprep.subr.bf16.mxu0 0
        %452 = vmatpush1.bf16.msra.mxu0 %v433
        %453 = vmatprep.subr.bf16.mxu0 0
        %454 = vmatpush1.bf16.msra.mxu0 %v434
        %455 = vmatprep.subr.bf16.mxu0 0
        %456 = vmatpush1.bf16.msra.mxu0 %v435
        %457 = vmatprep.subr.bf16.mxu0 0
        %458 = vmatpush1.bf16.msra.mxu0 %v436
        %459 = vmatprep.subr.bf16.mxu0 0
        %460 = vmatpush1.bf16.msra.mxu0 %v437
        %461 = vmatprep.subr.bf16.mxu0 0
        %462 = vmatpush1.bf16.msra.mxu0 %v438
        %463 = vmatprep.subr.bf16.mxu0 0
        %464 = vmatpush1.bf16.msra.mxu0 0
        %465 = vmatprep.subr.bf16.mxu0 0
        %466 = vmatpush1.bf16.msra.mxu0 0
        %467 = vmatprep.subr.bf16.mxu0 0
        %468 = vmatpush1.bf16.msra.mxu0 0
        %469 = vmatprep.subr.bf16.mxu0 0
        %470 = vmatpush1.bf16.msra.mxu0 0
        %471 = vmatprep.subr.bf16.mxu0 0
        %472 = vmatpush1.bf16.msra.mxu0 0
        %473 = vmatprep.subr.bf16.mxu0 0
        %474 = vmatpush1.bf16.msra.mxu0 0
        %475 = vmatprep.subr.bf16.mxu0 0
        %476 = vmatpush1.bf16.msra.mxu0 0
        %477 = vmatprep.subr.bf16.mxu0 0
        %478 = vmatpush1.bf16.msra.mxu0 0
        %479 = vmatprep.mubr.bf16.mxu0 0
        %480 = vmatmul.mubr.bf16.gmra.mrb[0].mxu0 %v365
        %v481 = vpop.f32.mrb[0].mxu0
        %v482 = vadd.f32 0.0, %v481
        %v483 = vpop.f32.mrb[0].mxu0
        %v484 = vpop.f32.mrb[0].mxu0
        %v485 = vpop.f32.mrb[0].mxu0
        %486 = vdwg.mxu0
        %v503 = vunpack.c.l.b16 %v367
        %v504 = vunpack.c.l.b16 %v368
        %v505 = vunpack.c.l.b16 %v369
        %v506 = vunpack.c.l.b16 %v370
        %v507 = vunpack.c.l.b16 %v371
        %v508 = vunpack.c.l.b16 %v372
        %v509 = vunpack.c.l.b16 %v373
        %v510 = vunpack.c.l.b16 %v374
        %v511 = vunpack.c.l.b16 %v375
        %v512 = vunpack.c.l.b16 %v376
        %v513 = vunpack.c.l.b16 %v377
        %v514 = vunpack.c.l.b16 %v378
        %v515 = vunpack.c.l.b16 %v379
        %v516 = vunpack.c.l.b16 %v380
        %v517 = vunpack.c.l.b16 %v381
        %v518 = vunpack.c.l.b16 %v382
        %v519 = vpack.c.b16 %v504, %v503
        %v520 = vpack.c.b16 %v506, %v505
        %v521 = vpack.c.b16 %v508, %v507
        %v522 = vpack.c.b16 %v510, %v509
        %v523 = vpack.c.b16 %v512, %v511
        %v524 = vpack.c.b16 %v514, %v513
        %v525 = vpack.c.b16 %v516, %v515
        %v526 = vpack.c.b16 %v518, %v517
        %535 = vmatprep.subr.bf16.mxu0 0
        %536 = vmatpush1.bf16.msra.mxu0 %v519
        %537 = vmatprep.subr.bf16.mxu0 0
        %538 = vmatpush1.bf16.msra.mxu0 %v520
        %539 = vmatprep.subr.bf16.mxu0 0
        %540 = vmatpush1.bf16.msra.mxu0 %v521
        %541 = vmatprep.subr.bf16.mxu0 0
        %542 = vmatpush1.bf16.msra.mxu0 %v522
        %543 = vmatprep.subr.bf16.mxu0 0
        %544 = vmatpush1.bf16.msra.mxu0 %v523
        %545 = vmatprep.subr.bf16.mxu0 0
        %546 = vmatpush1.bf16.msra.mxu0 %v524
        %547 = vmatprep.subr.bf16.mxu0 0
        %548 = vmatpush1.bf16.msra.mxu0 %v525
        %549 = vmatprep.subr.bf16.mxu0 0
        %550 = vmatpush1.bf16.msra.mxu0 %v526
        %551 = vmatprep.subr.bf16.mxu0 0
        %552 = vmatpush1.bf16.msra.mxu0 0
        %553 = vmatprep.subr.bf16.mxu0 0
        %554 = vmatpush1.bf16.msra.mxu0 0
        %555 = vmatprep.subr.bf16.mxu0 0
        %556 = vmatpush1.bf16.msra.mxu0 0
        %557 = vmatprep.subr.bf16.mxu0 0
        %558 = vmatpush1.bf16.msra.mxu0 0
        %559 = vmatprep.subr.bf16.mxu0 0
        %560 = vmatpush1.bf16.msra.mxu0 0
        %561 = vmatprep.subr.bf16.mxu0 0
        %562 = vmatpush1.bf16.msra.mxu0 0
        %563 = vmatprep.subr.bf16.mxu0 0
        %564 = vmatpush1.bf16.msra.mxu0 0
        %565 = vmatprep.subr.bf16.mxu0 0
        %566 = vmatpush1.bf16.msra.mxu0 0
        %567 = vmatprep.mubr.bf16.mxu0 0
        %568 = vmatmul.mubr.bf16.gmra.mrb[0].mxu0 %v366
        %v569 = vpop.f32.mrb[0].mxu0
        %v570 = vadd.f32 %v482, %v569
        %v571 = vpop.f32.mrb[0].mxu0
        %v572 = vpop.f32.mrb[0].mxu0
        %v573 = vpop.f32.mrb[0].mxu0
        %574 = vdwg.mxu0
        %v575 = vld [vmem:[%s3] sm:$0xff]
        %v576 = vadd.f32 %v570, %v575
        %vm577 = vcmp.gt.bf16.partialorder %v365, 0
        %v578 = vsel %vm577, 65537, 0
        %v579 = vunpack.c.l.b16 %v578
        %vm580 = vcmp.ne.s32.totalorder %v579, 0
        %v581 = vsel %vm580, 0.0, %v364
        %v582 = vadd.f32 %v581, %v576
        %vm583 = vcmp.gt.f32.partialorder %v582, 1.0
        %v584 = vsel %vm583, 1, 0
        %v585 = vcvt.s32.f32 %v584
        %v586 = vpack.c.bf16 %v585, %v585
        %587 = vst [vmem:[%s342] sm:$0xff] %v582
        %588 = vst [vmem:[%s349] sm:$0xf] %v586
        %s589 = scalar_lea.vmem %s302, 4 [#allocation4]
        %v590 = vld [vmem:[%s589] sm:$0xf]
        %v591 = vld [vmem:[#allocation7] sm:$0xf]
        %v592 = vld [vmem:[#allocation7 + $0x4] sm:$0xf]
        %v593 = vld [vmem:[#allocation7 + $0x8] sm:$0xf]
        %v594 = vld [vmem:[#allocation7 + $0xc] sm:$0xf]
        %v595 = vld [vmem:[#allocation7 + $0x10] sm:$0xf]
        %v596 = vld [vmem:[#allocation7 + $0x14] sm:$0xf]
        %v597 = vld [vmem:[#allocation7 + $0x18] sm:$0xf]
        %v598 = vld [vmem:[#allocation7 + $0x1c] sm:$0xf]
        %v599 = vld [vmem:[#allocation7 + $0x20] sm:$0xf]
        %v600 = vld [vmem:[#allocation7 + $0x24] sm:$0xf]
        %v601 = vld [vmem:[#allocation7 + $0x28] sm:$0xf]
        %v602 = vld [vmem:[#allocation7 + $0x2c] sm:$0xf]
        %v603 = vld [vmem:[#allocation7 + $0x30] sm:$0xf]
        %v604 = vld [vmem:[#allocation7 + $0x34] sm:$0xf]
        %v605 = vld [vmem:[#allocation7 + $0x38] sm:$0xf]
        %v606 = vld [vmem:[#allocation7 + $0x3c] sm:$0xf]
        %v607 = vld [vmem:[#allocation9] sm:$0xf]
        %v608 = vld [vmem:[#allocation9 + $0x4] sm:$0xf]
        %v609 = vld [vmem:[#allocation9 + $0x8] sm:$0xf]
        %v610 = vld [vmem:[#allocation9 + $0xc] sm:$0xf]
        %v611 = vld [vmem:[#allocation9 + $0x10] sm:$0xf]
        %v612 = vld [vmem:[#allocation9 + $0x14] sm:$0xf]
        %v613 = vld [vmem:[#allocation9 + $0x18] sm:$0xf]
        %v614 = vld [vmem:[#allocation9 + $0x1c] sm:$0xf]
        %v615 = vld [vmem:[#allocation9 + $0x20] sm:$0xf]
        %v616 = vld [vmem:[#allocation9 + $0x24] sm:$0xf]
        %v617 = vld [vmem:[#allocation9 + $0x28] sm:$0xf]
        %v618 = vld [vmem:[#allocation9 + $0x2c] sm:$0xf]
        %v619 = vld [vmem:[#allocation9 + $0x30] sm:$0xf]
        %v620 = vld [vmem:[#allocation9 + $0x34] sm:$0xf]
        %v621 = vld [vmem:[#allocation9 + $0x38] sm:$0xf]
        %v622 = vld [vmem:[#allocation9 + $0x3c] sm:$0xf]
        %v639 = vunpack.c.l.b16 %v607
        %v640 = vunpack.c.l.b16 %v608
        %v641 = vunpack.c.l.b16 %v609
        %v642 = vunpack.c.l.b16 %v610
        %v643 = vunpack.c.l.b16 %v611
        %v644 = vunpack.c.l.b16 %v612
        %v645 = vunpack.c.l.b16 %v613
        %v646 = vunpack.c.l.b16 %v614
        %v647 = vunpack.c.l.b16 %v615
        %v648 = vunpack.c.l.b16 %v616
        %v649 = vunpack.c.l.b16 %v617
        %v650 = vunpack.c.l.b16 %v618
        %v651 = vunpack.c.l.b16 %v619
        %v652 = vunpack.c.l.b16 %v620
        %v653 = vunpack.c.l.b16 %v621
        %v654 = vunpack.c.l.b16 %v622
        %v655 = vpack.c.b16 %v640, %v639
        %v656 = vpack.c.b16 %v642, %v641
        %v657 = vpack.c.b16 %v644, %v643
        %v658 = vpack.c.b16 %v646, %v645
        %v659 = vpack.c.b16 %v648, %v647
        %v660 = vpack.c.b16 %v650, %v649
        %v661 = vpack.c.b16 %v652, %v651
        %v662 = vpack.c.b16 %v654, %v653
        %671 = vmatprep.subr.bf16.mxu0 0
        %672 = vmatpush1.bf16.msra.mxu0 %v655
        %673 = vmatprep.subr.bf16.mxu0 0
        %674 = vmatpush1.bf16.msra.mxu0 %v656
        %675 = vmatprep.subr.bf16.mxu0 0
        %676 = vmatpush1.bf16.msra.mxu0 %v657
        %677 = vmatprep.subr.bf16.mxu0 0
        %678 = vmatpush1.bf16.msra.mxu0 %v658
        %679 = vmatprep.subr.bf16.mxu0 0
        %680 = vmatpush1.bf16.msra.mxu0 %v659
        %681 = vmatprep.subr.bf16.mxu0 0
        %682 = vmatpush1.bf16.msra.mxu0 %v660
        %683 = vmatprep.subr.bf16.mxu0 0
        %684 = vmatpush1.bf16.msra.mxu0 %v661
        %685 = vmatprep.subr.bf16.mxu0 0
        %686 = vmatpush1.bf16.msra.mxu0 %v662
        %687 = vmatprep.subr.bf16.mxu0 0
        %688 = vmatpush1.bf16.msra.mxu0 0
        %689 = vmatprep.subr.bf16.mxu0 0
        %690 = vmatpush1.bf16.msra.mxu0 0
        %691 = vmatprep.subr.bf16.mxu0 0
        %692 = vmatpush1.bf16.msra.mxu0 0
        %693 = vmatprep.subr.bf16.mxu0 0
        %694 = vmatpush1.bf16.msra.mxu0 0
        %695 = vmatprep.subr.bf16.mxu0 0
        %696 = vmatpush1.bf16.msra.mxu0 0
        %697 = vmatprep.subr.bf16.mxu0 0
        %698 = vmatpush1.bf16.msra.mxu0 0
        %699 = vmatprep.subr.bf16.mxu0 0
        %700 = vmatpush1.bf16.msra.mxu0 0
        %701 = vmatprep.subr.bf16.mxu0 0
        %702 = vmatpush1.bf16.msra.mxu0 0
        %703 = vmatprep.mubr.bf16.mxu0 0
        %704 = vmatmul.mubr.bf16.gmra.mrb[0].mxu0 %v586
        %v705 = vpop.f32.mrb[0].mxu0
        %v706 = vadd.f32 0.0, %v705
        %v707 = vpop.f32.mrb[0].mxu0
        %v708 = vpop.f32.mrb[0].mxu0
        %v709 = vpop.f32.mrb[0].mxu0
        %710 = vdwg.mxu0
        %v727 = vunpack.c.l.b16 %v591
        %v728 = vunpack.c.l.b16 %v592
        %v729 = vunpack.c.l.b16 %v593
        %v730 = vunpack.c.l.b16 %v594
        %v731 = vunpack.c.l.b16 %v595
        %v732 = vunpack.c.l.b16 %v596
        %v733 = vunpack.c.l.b16 %v597
        %v734 = vunpack.c.l.b16 %v598
        %v735 = vunpack.c.l.b16 %v599
        %v736 = vunpack.c.l.b16 %v600
        %v737 = vunpack.c.l.b16 %v601
        %v738 = vunpack.c.l.b16 %v602
        %v739 = vunpack.c.l.b16 %v603
        %v740 = vunpack.c.l.b16 %v604
        %v741 = vunpack.c.l.b16 %v605
        %v742 = vunpack.c.l.b16 %v606
        %v743 = vpack.c.b16 %v728, %v727
        %v744 = vpack.c.b16 %v730, %v729
        %v745 = vpack.c.b16 %v732, %v731
        %v746 = vpack.c.b16 %v734, %v733
        %v747 = vpack.c.b16 %v736, %v735
        %v748 = vpack.c.b16 %v738, %v737
        %v749 = vpack.c.b16 %v740, %v739
        %v750 = vpack.c.b16 %v742, %v741
        %759 = vmatprep.subr.bf16.mxu0 0
        %760 = vmatpush1.bf16.msra.mxu0 %v743
        %761 = vmatprep.subr.bf16.mxu0 0
        %762 = vmatpush1.bf16.msra.mxu0 %v744
        %763 = vmatprep.subr.bf16.mxu0 0
        %764 = vmatpush1.bf16.msra.mxu0 %v745
        %765 = vmatprep.subr.bf16.mxu0 0
        %766 = vmatpush1.bf16.msra.mxu0 %v746
        %767 = vmatprep.subr.bf16.mxu0 0
        %768 = vmatpush1.bf16.msra.mxu0 %v747
        %769 = vmatprep.subr.bf16.mxu0 0
        %770 = vmatpush1.bf16.msra.mxu0 %v748
        %771 = vmatprep.subr.bf16.mxu0 0
        %772 = vmatpush1.bf16.msra.mxu0 %v749
        %773 = vmatprep.subr.bf16.mxu0 0
        %774 = vmatpush1.bf16.msra.mxu0 %v750
        %775 = vmatprep.subr.bf16.mxu0 0
        %776 = vmatpush1.bf16.msra.mxu0 0
        %777 = vmatprep.subr.bf16.mxu0 0
        %778 = vmatpush1.bf16.msra.mxu0 0
        %779 = vmatprep.subr.bf16.mxu0 0
        %780 = vmatpush1.bf16.msra.mxu0 0
        %781 = vmatprep.subr.bf16.mxu0 0
        %782 = vmatpush1.bf16.msra.mxu0 0
        %783 = vmatprep.subr.bf16.mxu0 0
        %784 = vmatpush1.bf16.msra.mxu0 0
        %785 = vmatprep.subr.bf16.mxu0 0
        %786 = vmatpush1.bf16.msra.mxu0 0
        %787 = vmatprep.subr.bf16.mxu0 0
        %788 = vmatpush1.bf16.msra.mxu0 0
        %789 = vmatprep.subr.bf16.mxu0 0
        %790 = vmatpush1.bf16.msra.mxu0 0
        %791 = vmatprep.mubr.bf16.mxu0 0
        %792 = vmatmul.mubr.bf16.gmra.mrb[0].mxu0 %v590
        %v793 = vpop.f32.mrb[0].mxu0
        %v794 = vadd.f32 %v706, %v793
        %v795 = vpop.f32.mrb[0].mxu0
        %v796 = vpop.f32.mrb[0].mxu0
        %v797 = vpop.f32.mrb[0].mxu0
        %798 = vdwg.mxu0
        %v799 = vld [vmem:[%s3] sm:$0xff]
        %v800 = vadd.f32 %v794, %v799
        %vm801 = vcmp.gt.bf16.partialorder %v586, 0
        %v802 = vsel %vm801, 65537, 0
        %v803 = vunpack.c.l.b16 %v802
        %vm804 = vcmp.ne.s32.totalorder %v803, 0
        %v805 = vsel %vm804, 0.0, %v582
        %v806 = vadd.f32 %v805, %v800
        %vm807 = vcmp.gt.f32.partialorder %v806, 1.0
        %v808 = vsel %vm807, 1, 0
        %v809 = vcvt.s32.f32 %v808
        %v810 = vpack.c.bf16 %v809, %v809
        %s811 = scalar_lea.vmem %s342, 8 [#allocation12]
        %812 = vst [vmem:[%s811] sm:$0xff] %v806
        %s813 = scalar_lea.vmem %s349, 4 [#allocation13]
        %814 = vst [vmem:[%s813] sm:$0xf] %v810
        %s815 = scalar_lea.vmem %s302, 8 [#allocation4]
        %v816 = vld [vmem:[%s815] sm:$0xf]
        %v817 = vld [vmem:[#allocation7] sm:$0xf]
        %v818 = vld [vmem:[#allocation7 + $0x4] sm:$0xf]
        %v819 = vld [vmem:[#allocation7 + $0x8] sm:$0xf]
        %v820 = vld [vmem:[#allocation7 + $0xc] sm:$0xf]
        %v821 = vld [vmem:[#allocation7 + $0x10] sm:$0xf]
        %v822 = vld [vmem:[#allocation7 + $0x14] sm:$0xf]
        %v823 = vld [vmem:[#allocation7 + $0x18] sm:$0xf]
        %v824 = vld [vmem:[#allocation7 + $0x1c] sm:$0xf]
        %v825 = vld [vmem:[#allocation7 + $0x20] sm:$0xf]
        %v826 = vld [vmem:[#allocation7 + $0x24] sm:$0xf]
        %v827 = vld [vmem:[#allocation7 + $0x28] sm:$0xf]
        %v828 = vld [vmem:[#allocation7 + $0x2c] sm:$0xf]
        %v829 = vld [vmem:[#allocation7 + $0x30] sm:$0xf]
        %v830 = vld [vmem:[#allocation7 + $0x34] sm:$0xf]
        %v831 = vld [vmem:[#allocation7 + $0x38] sm:$0xf]
        %v832 = vld [vmem:[#allocation7 + $0x3c] sm:$0xf]
        %v833 = vld [vmem:[#allocation9] sm:$0xf]
        %v834 = vld [vmem:[#allocation9 + $0x4] sm:$0xf]
        %v835 = vld [vmem:[#allocation9 + $0x8] sm:$0xf]
        %v836 = vld [vmem:[#allocation9 + $0xc] sm:$0xf]
        %v837 = vld [vmem:[#allocation9 + $0x10] sm:$0xf]
        %v838 = vld [vmem:[#allocation9 + $0x14] sm:$0xf]
        %v839 = vld [vmem:[#allocation9 + $0x18] sm:$0xf]
        %v840 = vld [vmem:[#allocation9 + $0x1c] sm:$0xf]
        %v841 = vld [vmem:[#allocation9 + $0x20] sm:$0xf]
        %v842 = vld [vmem:[#allocation9 + $0x24] sm:$0xf]
        %v843 = vld [vmem:[#allocation9 + $0x28] sm:$0xf]
        %v844 = vld [vmem:[#allocation9 + $0x2c] sm:$0xf]
        %v845 = vld [vmem:[#allocation9 + $0x30] sm:$0xf]
        %v846 = vld [vmem:[#allocation9 + $0x34] sm:$0xf]
        %v847 = vld [vmem:[#allocation9 + $0x38] sm:$0xf]
        %v848 = vld [vmem:[#allocation9 + $0x3c] sm:$0xf]
        %v865 = vunpack.c.l.b16 %v833
        %v866 = vunpack.c.l.b16 %v834
        %v867 = vunpack.c.l.b16 %v835
        %v868 = vunpack.c.l.b16 %v836
        %v869 = vunpack.c.l.b16 %v837
        %v870 = vunpack.c.l.b16 %v838
        %v871 = vunpack.c.l.b16 %v839
        %v872 = vunpack.c.l.b16 %v840
        %v873 = vunpack.c.l.b16 %v841
        %v874 = vunpack.c.l.b16 %v842
        %v875 = vunpack.c.l.b16 %v843
        %v876 = vunpack.c.l.b16 %v844
        %v877 = vunpack.c.l.b16 %v845
        %v878 = vunpack.c.l.b16 %v846
        %v879 = vunpack.c.l.b16 %v847
        %v880 = vunpack.c.l.b16 %v848
        %v881 = vpack.c.b16 %v866, %v865
        %v882 = vpack.c.b16 %v868, %v867
        %v883 = vpack.c.b16 %v870, %v869
        %v884 = vpack.c.b16 %v872, %v871
        %v885 = vpack.c.b16 %v874, %v873
        %v886 = vpack.c.b16 %v876, %v875
        %v887 = vpack.c.b16 %v878, %v877
        %v888 = vpack.c.b16 %v880, %v879
        %897 = vmatprep.subr.bf16.mxu0 0
        %898 = vmatpush1.bf16.msra.mxu0 %v881
        %899 = vmatprep.subr.bf16.mxu0 0
        %900 = vmatpush1.bf16.msra.mxu0 %v882
        %901 = vmatprep.subr.bf16.mxu0 0
        %902 = vmatpush1.bf16.msra.mxu0 %v883
        %903 = vmatprep.subr.bf16.mxu0 0
        %904 = vmatpush1.bf16.msra.mxu0 %v884
        %905 = vmatprep.subr.bf16.mxu0 0
        %906 = vmatpush1.bf16.msra.mxu0 %v885
        %907 = vmatprep.subr.bf16.mxu0 0
        %908 = vmatpush1.bf16.msra.mxu0 %v886
        %909 = vmatprep.subr.bf16.mxu0 0
        %910 = vmatpush1.bf16.msra.mxu0 %v887
        %911 = vmatprep.subr.bf16.mxu0 0
        %912 = vmatpush1.bf16.msra.mxu0 %v888
        %913 = vmatprep.subr.bf16.mxu0 0
        %914 = vmatpush1.bf16.msra.mxu0 0
        %915 = vmatprep.subr.bf16.mxu0 0
        %916 = vmatpush1.bf16.msra.mxu0 0
        %917 = vmatprep.subr.bf16.mxu0 0
        %918 = vmatpush1.bf16.msra.mxu0 0
        %919 = vmatprep.subr.bf16.mxu0 0
        %920 = vmatpush1.bf16.msra.mxu0 0
        %921 = vmatprep.subr.bf16.mxu0 0
        %922 = vmatpush1.bf16.msra.mxu0 0
        %923 = vmatprep.subr.bf16.mxu0 0
        %924 = vmatpush1.bf16.msra.mxu0 0
        %925 = vmatprep.subr.bf16.mxu0 0
        %926 = vmatpush1.bf16.msra.mxu0 0
        %927 = vmatprep.subr.bf16.mxu0 0
        %928 = vmatpush1.bf16.msra.mxu0 0
        %929 = vmatprep.mubr.bf16.mxu0 0
        %930 = vmatmul.mubr.bf16.gmra.mrb[0].mxu0 %v810
        %v931 = vpop.f32.mrb[0].mxu0
        %v932 = vadd.f32 0.0, %v931
        %v933 = vpop.f32.mrb[0].mxu0
        %v934 = vpop.f32.mrb[0].mxu0
        %v935 = vpop.f32.mrb[0].mxu0
        %936 = vdwg.mxu0
        %v953 = vunpack.c.l.b16 %v817
        %v954 = vunpack.c.l.b16 %v818
        %v955 = vunpack.c.l.b16 %v819
        %v956 = vunpack.c.l.b16 %v820
        %v957 = vunpack.c.l.b16 %v821
        %v958 = vunpack.c.l.b16 %v822
        %v959 = vunpack.c.l.b16 %v823
        %v960 = vunpack.c.l.b16 %v824
        %v961 = vunpack.c.l.b16 %v825
        %v962 = vunpack.c.l.b16 %v826
        %v963 = vunpack.c.l.b16 %v827
        %v964 = vunpack.c.l.b16 %v828
        %v965 = vunpack.c.l.b16 %v829
        %v966 = vunpack.c.l.b16 %v830
        %v967 = vunpack.c.l.b16 %v831
        %v968 = vunpack.c.l.b16 %v832
        %v969 = vpack.c.b16 %v954, %v953
        %v970 = vpack.c.b16 %v956, %v955
        %v971 = vpack.c.b16 %v958, %v957
        %v972 = vpack.c.b16 %v960, %v959
        %v973 = vpack.c.b16 %v962, %v961
        %v974 = vpack.c.b16 %v964, %v963
        %v975 = vpack.c.b16 %v966, %v965
        %v976 = vpack.c.b16 %v968, %v967
        %985 = vmatprep.subr.bf16.mxu0 0
        %986 = vmatpush1.bf16.msra.mxu0 %v969
        %987 = vmatprep.subr.bf16.mxu0 0
        %988 = vmatpush1.bf16.msra.mxu0 %v970
        %989 = vmatprep.subr.bf16.mxu0 0
        %990 = vmatpush1.bf16.msra.mxu0 %v971
        %991 = vmatprep.subr.bf16.mxu0 0
        %992 = vmatpush1.bf16.msra.mxu0 %v972
        %993 = vmatprep.subr.bf16.mxu0 0
        %994 = vmatpush1.bf16.msra.mxu0 %v973
        %995 = vmatprep.subr.bf16.mxu0 0
        %996 = vmatpush1.bf16.msra.mxu0 %v974
        %997 = vmatprep.subr.bf16.mxu0 0
        %998 = vmatpush1.bf16.msra.mxu0 %v975
        %999 = vmatprep.subr.bf16.mxu0 0
        %1000 = vmatpush1.bf16.msra.mxu0 %v976
        %1001 = vmatprep.subr.bf16.mxu0 0
        %1002 = vmatpush1.bf16.msra.mxu0 0
        %1003 = vmatprep.subr.bf16.mxu0 0
        %1004 = vmatpush1.bf16.msra.mxu0 0
        %1005 = vmatprep.subr.bf16.mxu0 0
        %1006 = vmatpush1.bf16.msra.mxu0 0
        %1007 = vmatprep.subr.bf16.mxu0 0
        %1008 = vmatpush1.bf16.msra.mxu0 0
        %1009 = vmatprep.subr.bf16.mxu0 0
        %1010 = vmatpush1.bf16.msra.mxu0 0
        %1011 = vmatprep.subr.bf16.mxu0 0
        %1012 = vmatpush1.bf16.msra.mxu0 0
        %1013 = vmatprep.subr.bf16.mxu0 0
        %1014 = vmatpush1.bf16.msra.mxu0 0
        %1015 = vmatprep.subr.bf16.mxu0 0
        %1016 = vmatpush1.bf16.msra.mxu0 0
        %1017 = vmatprep.mubr.bf16.mxu0 0
        %1018 = vmatmul.mubr.bf16.gmra.mrb[0].mxu0 %v816
        %v1019 = vpop.f32.mrb[0].mxu0
        %v1020 = vadd.f32 %v932, %v1019
        %v1021 = vpop.f32.mrb[0].mxu0
        %v1022 = vpop.f32.mrb[0].mxu0
        %v1023 = vpop.f32.mrb[0].mxu0
        %1024 = vdwg.mxu0
        %v1025 = vld [vmem:[%s3] sm:$0xff]
        %v1026 = vadd.f32 %v1020, %v1025
        %vm1027 = vcmp.gt.bf16.partialorder %v810, 0
        %v1028 = vsel %vm1027, 65537, 0
        %v1029 = vunpack.c.l.b16 %v1028
        %vm1030 = vcmp.ne.s32.totalorder %v1029, 0
        %v1031 = vsel %vm1030, 0.0, %v806
        %v1032 = vadd.f32 %v1031, %v1026
        %vm1033 = vcmp.gt.f32.partialorder %v1032, 1.0
        %v1034 = vsel %vm1033, 1, 0
        %v1035 = vcvt.s32.f32 %v1034
        %v1036 = vpack.c.bf16 %v1035, %v1035
        %s1037 = scalar_lea.vmem %s342, 16 [#allocation12]
        %1038 = vst [vmem:[%s1037] sm:$0xff] %v1032
        %s1039 = scalar_lea.vmem %s349, 8 [#allocation13]
        %1040 = vst [vmem:[%s1039] sm:$0xf] %v1036
        %s1041 = scalar_lea.vmem %s302, 12 [#allocation4]
        %v1042 = vld [vmem:[%s1041] sm:$0xf]
        %v1043 = vld [vmem:[#allocation7] sm:$0xf]
        %v1044 = vld [vmem:[#allocation7 + $0x4] sm:$0xf]
        %v1045 = vld [vmem:[#allocation7 + $0x8] sm:$0xf]
        %v1046 = vld [vmem:[#allocation7 + $0xc] sm:$0xf]
        %v1047 = vld [vmem:[#allocation7 + $0x10] sm:$0xf]
        %v1048 = vld [vmem:[#allocation7 + $0x14] sm:$0xf]
        %v1049 = vld [vmem:[#allocation7 + $0x18] sm:$0xf]
        %v1050 = vld [vmem:[#allocation7 + $0x1c] sm:$0xf]
        %v1051 = vld [vmem:[#allocation7 + $0x20] sm:$0xf]
        %v1052 = vld [vmem:[#allocation7 + $0x24] sm:$0xf]
        %v1053 = vld [vmem:[#allocation7 + $0x28] sm:$0xf]
        %v1054 = vld [vmem:[#allocation7 + $0x2c] sm:$0xf]
        %v1055 = vld [vmem:[#allocation7 + $0x30] sm:$0xf]
        %v1056 = vld [vmem:[#allocation7 + $0x34] sm:$0xf]
        %v1057 = vld [vmem:[#allocation7 + $0x38] sm:$0xf]
        %v1058 = vld [vmem:[#allocation7 + $0x3c] sm:$0xf]
        %v1059 = vld [vmem:[#allocation9] sm:$0xf]
        %v1060 = vld [vmem:[#allocation9 + $0x4] sm:$0xf]
        %v1061 = vld [vmem:[#allocation9 + $0x8] sm:$0xf]
        %v1062 = vld [vmem:[#allocation9 + $0xc] sm:$0xf]
        %v1063 = vld [vmem:[#allocation9 + $0x10] sm:$0xf]
        %v1064 = vld [vmem:[#allocation9 + $0x14] sm:$0xf]
        %v1065 = vld [vmem:[#allocation9 + $0x18] sm:$0xf]
        %v1066 = vld [vmem:[#allocation9 + $0x1c] sm:$0xf]
        %v1067 = vld [vmem:[#allocation9 + $0x20] sm:$0xf]
        %v1068 = vld [vmem:[#allocation9 + $0x24] sm:$0xf]
        %v1069 = vld [vmem:[#allocation9 + $0x28] sm:$0xf]
        %v1070 = vld [vmem:[#allocation9 + $0x2c] sm:$0xf]
        %v1071 = vld [vmem:[#allocation9 + $0x30] sm:$0xf]
        %v1072 = vld [vmem:[#allocation9 + $0x34] sm:$0xf]
        %v1073 = vld [vmem:[#allocation9 + $0x38] sm:$0xf]
        %v1074 = vld [vmem:[#allocation9 + $0x3c] sm:$0xf]
        %v1091 = vunpack.c.l.b16 %v1059
        %v1092 = vunpack.c.l.b16 %v1060
        %v1093 = vunpack.c.l.b16 %v1061
        %v1094 = vunpack.c.l.b16 %v1062
        %v1095 = vunpack.c.l.b16 %v1063
        %v1096 = vunpack.c.l.b16 %v1064
        %v1097 = vunpack.c.l.b16 %v1065
        %v1098 = vunpack.c.l.b16 %v1066
        %v1099 = vunpack.c.l.b16 %v1067
        %v1100 = vunpack.c.l.b16 %v1068
        %v1101 = vunpack.c.l.b16 %v1069
        %v1102 = vunpack.c.l.b16 %v1070
        %v1103 = vunpack.c.l.b16 %v1071
        %v1104 = vunpack.c.l.b16 %v1072
        %v1105 = vunpack.c.l.b16 %v1073
        %v1106 = vunpack.c.l.b16 %v1074
        %v1107 = vpack.c.b16 %v1092, %v1091
        %v1108 = vpack.c.b16 %v1094, %v1093
        %v1109 = vpack.c.b16 %v1096, %v1095
        %v1110 = vpack.c.b16 %v1098, %v1097
        %v1111 = vpack.c.b16 %v1100, %v1099
        %v1112 = vpack.c.b16 %v1102, %v1101
        %v1113 = vpack.c.b16 %v1104, %v1103
        %v1114 = vpack.c.b16 %v1106, %v1105
        %1123 = vmatprep.subr.bf16.mxu0 0
        %1124 = vmatpush1.bf16.msra.mxu0 %v1107
        %1125 = vmatprep.subr.bf16.mxu0 0
        %1126 = vmatpush1.bf16.msra.mxu0 %v1108
        %1127 = vmatprep.subr.bf16.mxu0 0
        %1128 = vmatpush1.bf16.msra.mxu0 %v1109
        %1129 = vmatprep.subr.bf16.mxu0 0
        %1130 = vmatpush1.bf16.msra.mxu0 %v1110
        %1131 = vmatprep.subr.bf16.mxu0 0
        %1132 = vmatpush1.bf16.msra.mxu0 %v1111
        %1133 = vmatprep.subr.bf16.mxu0 0
        %1134 = vmatpush1.bf16.msra.mxu0 %v1112
        %1135 = vmatprep.subr.bf16.mxu0 0
        %1136 = vmatpush1.bf16.msra.mxu0 %v1113
        %1137 = vmatprep.subr.bf16.mxu0 0
        %1138 = vmatpush1.bf16.msra.mxu0 %v1114
        %1139 = vmatprep.subr.bf16.mxu0 0
        %1140 = vmatpush1.bf16.msra.mxu0 0
        %1141 = vmatprep.subr.bf16.mxu0 0
        %1142 = vmatpush1.bf16.msra.mxu0 0
        %1143 = vmatprep.subr.bf16.mxu0 0
        %1144 = vmatpush1.bf16.msra.mxu0 0
        %1145 = vmatprep.subr.bf16.mxu0 0
        %1146 = vmatpush1.bf16.msra.mxu0 0
        %1147 = vmatprep.subr.bf16.mxu0 0
        %1148 = vmatpush1.bf16.msra.mxu0 0
        %1149 = vmatprep.subr.bf16.mxu0 0
        %1150 = vmatpush1.bf16.msra.mxu0 0
        %1151 = vmatprep.subr.bf16.mxu0 0
        %1152 = vmatpush1.bf16.msra.mxu0 0
        %1153 = vmatprep.subr.bf16.mxu0 0
        %1154 = vmatpush1.bf16.msra.mxu0 0
        %1155 = vmatprep.mubr.bf16.mxu0 0
        %1156 = vmatmul.mubr.bf16.gmra.mrb[0].mxu0 %v1036
        %v1157 = vpop.f32.mrb[0].mxu0
        %v1158 = vadd.f32 0.0, %v1157
        %v1159 = vpop.f32.mrb[0].mxu0
        %v1160 = vpop.f32.mrb[0].mxu0
        %v1161 = vpop.f32.mrb[0].mxu0
        %1162 = vdwg.mxu0
        %v1179 = vunpack.c.l.b16 %v1043
        %v1180 = vunpack.c.l.b16 %v1044
        %v1181 = vunpack.c.l.b16 %v1045
        %v1182 = vunpack.c.l.b16 %v1046
        %v1183 = vunpack.c.l.b16 %v1047
        %v1184 = vunpack.c.l.b16 %v1048
        %v1185 = vunpack.c.l.b16 %v1049
        %v1186 = vunpack.c.l.b16 %v1050
        %v1187 = vunpack.c.l.b16 %v1051
        %v1188 = vunpack.c.l.b16 %v1052
        %v1189 = vunpack.c.l.b16 %v1053
        %v1190 = vunpack.c.l.b16 %v1054
        %v1191 = vunpack.c.l.b16 %v1055
        %v1192 = vunpack.c.l.b16 %v1056
        %v1193 = vunpack.c.l.b16 %v1057
        %v1194 = vunpack.c.l.b16 %v1058
        %v1195 = vpack.c.b16 %v1180, %v1179
        %v1196 = vpack.c.b16 %v1182, %v1181
        %v1197 = vpack.c.b16 %v1184, %v1183
        %v1198 = vpack.c.b16 %v1186, %v1185
        %v1199 = vpack.c.b16 %v1188, %v1187
        %v1200 = vpack.c.b16 %v1190, %v1189
        %v1201 = vpack.c.b16 %v1192, %v1191
        %v1202 = vpack.c.b16 %v1194, %v1193
        %1211 = vmatprep.subr.bf16.mxu0 0
        %1212 = vmatpush1.bf16.msra.mxu0 %v1195
        %1213 = vmatprep.subr.bf16.mxu0 0
        %1214 = vmatpush1.bf16.msra.mxu0 %v1196
        %1215 = vmatprep.subr.bf16.mxu0 0
        %1216 = vmatpush1.bf16.msra.mxu0 %v1197
        %1217 = vmatprep.subr.bf16.mxu0 0
        %1218 = vmatpush1.bf16.msra.mxu0 %v1198
        %1219 = vmatprep.subr.bf16.mxu0 0
        %1220 = vmatpush1.bf16.msra.mxu0 %v1199
        %1221 = vmatprep.subr.bf16.mxu0 0
        %1222 = vmatpush1.bf16.msra.mxu0 %v1200
        %1223 = vmatprep.subr.bf16.mxu0 0
        %1224 = vmatpush1.bf16.msra.mxu0 %v1201
        %1225 = vmatprep.subr.bf16.mxu0 0
        %1226 = vmatpush1.bf16.msra.mxu0 %v1202
        %1227 = vmatprep.subr.bf16.mxu0 0
        %1228 = vmatpush1.bf16.msra.mxu0 0
        %1229 = vmatprep.subr.bf16.mxu0 0
        %1230 = vmatpush1.bf16.msra.mxu0 0
        %1231 = vmatprep.subr.bf16.mxu0 0
        %1232 = vmatpush1.bf16.msra.mxu0 0
        %1233 = vmatprep.subr.bf16.mxu0 0
        %1234 = vmatpush1.bf16.msra.mxu0 0
        %1235 = vmatprep.subr.bf16.mxu0 0
        %1236 = vmatpush1.bf16.msra.mxu0 0
        %1237 = vmatprep.subr.bf16.mxu0 0
        %1238 = vmatpush1.bf16.msra.mxu0 0
        %1239 = vmatprep.subr.bf16.mxu0 0
        %1240 = vmatpush1.bf16.msra.mxu0 0
        %1241 = vmatprep.subr.bf16.mxu0 0
        %1242 = vmatpush1.bf16.msra.mxu0 0
        %1243 = vmatprep.mubr.bf16.mxu0 0
        %1244 = vmatmul.mubr.bf16.gmra.mrb[0].mxu0 %v1042
        %v1245 = vpop.f32.mrb[0].mxu0
        %v1246 = vadd.f32 %v1158, %v1245
        %v1247 = vpop.f32.mrb[0].mxu0
        %v1248 = vpop.f32.mrb[0].mxu0
        %v1249 = vpop.f32.mrb[0].mxu0
        %1250 = vdwg.mxu0
        %v1251 = vld [vmem:[%s3] sm:$0xff]
        %v1252 = vadd.f32 %v1246, %v1251
        %vm1253 = vcmp.gt.bf16.partialorder %v1036, 0
        %v1254 = vsel %vm1253, 65537, 0
        %v1255 = vunpack.c.l.b16 %v1254
        %vm1256 = vcmp.ne.s32.totalorder %v1255, 0
        %v1257 = vsel %vm1256, 0.0, %v1032
        %v1258 = vadd.f32 %v1257, %v1252
        %vm1259 = vcmp.gt.f32.partialorder %v1258, 1.0
        %v1260 = vsel %vm1259, 1, 0
        %v1261 = vcvt.s32.f32 %v1260
        %v1262 = vpack.c.bf16 %v1261, %v1261
        %s1263 = scalar_lea.vmem %s342, 24 [#allocation12]
        %1264 = vst [vmem:[%s1263] sm:$0xff] %v1258
        %s1265 = scalar_lea.vmem %s349, 12 [#allocation13]
        %1266 = vst [vmem:[%s1265] sm:$0xf] %v1262
        %s1267 = scalar_lea.vmem %s302, 16 [#allocation4]
        %v1268 = vld [vmem:[%s1267] sm:$0xf]
        %v1269 = vld [vmem:[#allocation7] sm:$0xf]
        %v1270 = vld [vmem:[#allocation7 + $0x4] sm:$0xf]
        %v1271 = vld [vmem:[#allocation7 + $0x8] sm:$0xf]
        %v1272 = vld [vmem:[#allocation7 + $0xc] sm:$0xf]
        %v1273 = vld [vmem:[#allocation7 + $0x10] sm:$0xf]
        %v1274 = vld [vmem:[#allocation7 + $0x14] sm:$0xf]
        %v1275 = vld [vmem:[#allocation7 + $0x18] sm:$0xf]
        %v1276 = vld [vmem:[#allocation7 + $0x1c] sm:$0xf]
        %v1277 = vld [vmem:[#allocation7 + $0x20] sm:$0xf]
        %v1278 = vld [vmem:[#allocation7 + $0x24] sm:$0xf]
        %v1279 = vld [vmem:[#allocation7 + $0x28] sm:$0xf]
        %v1280 = vld [vmem:[#allocation7 + $0x2c] sm:$0xf]
        %v1281 = vld [vmem:[#allocation7 + $0x30] sm:$0xf]
        %v1282 = vld [vmem:[#allocation7 + $0x34] sm:$0xf]
        %v1283 = vld [vmem:[#allocation7 + $0x38] sm:$0xf]
        %v1284 = vld [vmem:[#allocation7 + $0x3c] sm:$0xf]
        %v1285 = vld [vmem:[#allocation9] sm:$0xf]
        %v1286 = vld [vmem:[#allocation9 + $0x4] sm:$0xf]
        %v1287 = vld [vmem:[#allocation9 + $0x8] sm:$0xf]
        %v1288 = vld [vmem:[#allocation9 + $0xc] sm:$0xf]
        %v1289 = vld [vmem:[#allocation9 + $0x10] sm:$0xf]
        %v1290 = vld [vmem:[#allocation9 + $0x14] sm:$0xf]
        %v1291 = vld [vmem:[#allocation9 + $0x18] sm:$0xf]
        %v1292 = vld [vmem:[#allocation9 + $0x1c] sm:$0xf]
        %v1293 = vld [vmem:[#allocation9 + $0x20] sm:$0xf]
        %v1294 = vld [vmem:[#allocation9 + $0x24] sm:$0xf]
        %v1295 = vld [vmem:[#allocation9 + $0x28] sm:$0xf]
        %v1296 = vld [vmem:[#allocation9 + $0x2c] sm:$0xf]
        %v1297 = vld [vmem:[#allocation9 + $0x30] sm:$0xf]
        %v1298 = vld [vmem:[#allocation9 + $0x34] sm:$0xf]
        %v1299 = vld [vmem:[#allocation9 + $0x38] sm:$0xf]
        %v1300 = vld [vmem:[#allocation9 + $0x3c] sm:$0xf]
        %v1317 = vunpack.c.l.b16 %v1285
        %v1318 = vunpack.c.l.b16 %v1286
        %v1319 = vunpack.c.l.b16 %v1287
        %v1320 = vunpack.c.l.b16 %v1288
        %v1321 = vunpack.c.l.b16 %v1289
        %v1322 = vunpack.c.l.b16 %v1290
        %v1323 = vunpack.c.l.b16 %v1291
        %v1324 = vunpack.c.l.b16 %v1292
        %v1325 = vunpack.c.l.b16 %v1293
        %v1326 = vunpack.c.l.b16 %v1294
        %v1327 = vunpack.c.l.b16 %v1295
        %v1328 = vunpack.c.l.b16 %v1296
        %v1329 = vunpack.c.l.b16 %v1297
        %v1330 = vunpack.c.l.b16 %v1298
        %v1331 = vunpack.c.l.b16 %v1299
        %v1332 = vunpack.c.l.b16 %v1300
        %v1333 = vpack.c.b16 %v1318, %v1317
        %v1334 = vpack.c.b16 %v1320, %v1319
        %v1335 = vpack.c.b16 %v1322, %v1321
        %v1336 = vpack.c.b16 %v1324, %v1323
        %v1337 = vpack.c.b16 %v1326, %v1325
        %v1338 = vpack.c.b16 %v1328, %v1327
        %v1339 = vpack.c.b16 %v1330, %v1329
        %v1340 = vpack.c.b16 %v1332, %v1331
        %1349 = vmatprep.subr.bf16.mxu0 0
        %1350 = vmatpush1.bf16.msra.mxu0 %v1333
        %1351 = vmatprep.subr.bf16.mxu0 0
        %1352 = vmatpush1.bf16.msra.mxu0 %v1334
        %1353 = vmatprep.subr.bf16.mxu0 0
        %1354 = vmatpush1.bf16.msra.mxu0 %v1335
        %1355 = vmatprep.subr.bf16.mxu0 0
        %1356 = vmatpush1.bf16.msra.mxu0 %v1336
        %1357 = vmatprep.subr.bf16.mxu0 0
        %1358 = vmatpush1.bf16.msra.mxu0 %v1337
        %1359 = vmatprep.subr.bf16.mxu0 0
        %1360 = vmatpush1.bf16.msra.mxu0 %v1338
        %1361 = vmatprep.subr.bf16.mxu0 0
        %1362 = vmatpush1.bf16.msra.mxu0 %v1339
        %1363 = vmatprep.subr.bf16.mxu0 0
        %1364 = vmatpush1.bf16.msra.mxu0 %v1340
        %1365 = vmatprep.subr.bf16.mxu0 0
        %1366 = vmatpush1.bf16.msra.mxu0 0
        %1367 = vmatprep.subr.bf16.mxu0 0
        %1368 = vmatpush1.bf16.msra.mxu0 0
        %1369 = vmatprep.subr.bf16.mxu0 0
        %1370 = vmatpush1.bf16.msra.mxu0 0
        %1371 = vmatprep.subr.bf16.mxu0 0
        %1372 = vmatpush1.bf16.msra.mxu0 0
        %1373 = vmatprep.subr.bf16.mxu0 0
        %1374 = vmatpush1.bf16.msra.mxu0 0
        %1375 = vmatprep.subr.bf16.mxu0 0
        %1376 = vmatpush1.bf16.msra.mxu0 0
        %1377 = vmatprep.subr.bf16.mxu0 0
        %1378 = vmatpush1.bf16.msra.mxu0 0
        %1379 = vmatprep.subr.bf16.mxu0 0
        %1380 = vmatpush1.bf16.msra.mxu0 0
        %1381 = vmatprep.mubr.bf16.mxu0 0
        %1382 = vmatmul.mubr.bf16.gmra.mrb[0].mxu0 %v1262
        %v1383 = vpop.f32.mrb[0].mxu0
        %v1384 = vadd.f32 0.0, %v1383
        %v1385 = vpop.f32.mrb[0].mxu0
        %v1386 = vpop.f32.mrb[0].mxu0
        %v1387 = vpop.f32.mrb[0].mxu0
        %1388 = vdwg.mxu0
        %v1405 = vunpack.c.l.b16 %v1269
        %v1406 = vunpack.c.l.b16 %v1270
        %v1407 = vunpack.c.l.b16 %v1271
        %v1408 = vunpack.c.l.b16 %v1272
        %v1409 = vunpack.c.l.b16 %v1273
        %v1410 = vunpack.c.l.b16 %v1274
        %v1411 = vunpack.c.l.b16 %v1275
        %v1412 = vunpack.c.l.b16 %v1276
        %v1413 = vunpack.c.l.b16 %v1277
        %v1414 = vunpack.c.l.b16 %v1278
        %v1415 = vunpack.c.l.b16 %v1279
        %v1416 = vunpack.c.l.b16 %v1280
        %v1417 = vunpack.c.l.b16 %v1281
        %v1418 = vunpack.c.l.b16 %v1282
        %v1419 = vunpack.c.l.b16 %v1283
        %v1420 = vunpack.c.l.b16 %v1284
        %v1421 = vpack.c.b16 %v1406, %v1405
        %v1422 = vpack.c.b16 %v1408, %v1407
        %v1423 = vpack.c.b16 %v1410, %v1409
        %v1424 = vpack.c.b16 %v1412, %v1411
        %v1425 = vpack.c.b16 %v1414, %v1413
        %v1426 = vpack.c.b16 %v1416, %v1415
        %v1427 = vpack.c.b16 %v1418, %v1417
        %v1428 = vpack.c.b16 %v1420, %v1419
        %1437 = vmatprep.subr.bf16.mxu0 0
        %1438 = vmatpush1.bf16.msra.mxu0 %v1421
        %1439 = vmatprep.subr.bf16.mxu0 0
        %1440 = vmatpush1.bf16.msra.mxu0 %v1422
        %1441 = vmatprep.subr.bf16.mxu0 0
        %1442 = vmatpush1.bf16.msra.mxu0 %v1423
        %1443 = vmatprep.subr.bf16.mxu0 0
        %1444 = vmatpush1.bf16.msra.mxu0 %v1424
        %1445 = vmatprep.subr.bf16.mxu0 0
        %1446 = vmatpush1.bf16.msra.mxu0 %v1425
        %1447 = vmatprep.subr.bf16.mxu0 0
        %1448 = vmatpush1.bf16.msra.mxu0 %v1426
        %1449 = vmatprep.subr.bf16.mxu0 0
        %1450 = vmatpush1.bf16.msra.mxu0 %v1427
        %1451 = vmatprep.subr.bf16.mxu0 0
        %1452 = vmatpush1.bf16.msra.mxu0 %v1428
        %1453 = vmatprep.subr.bf16.mxu0 0
        %1454 = vmatpush1.bf16.msra.mxu0 0
        %1455 = vmatprep.subr.bf16.mxu0 0
        %1456 = vmatpush1.bf16.msra.mxu0 0
        %1457 = vmatprep.subr.bf16.mxu0 0
        %1458 = vmatpush1.bf16.msra.mxu0 0
        %1459 = vmatprep.subr.bf16.mxu0 0
        %1460 = vmatpush1.bf16.msra.mxu0 0
        %1461 = vmatprep.subr.bf16.mxu0 0
        %1462 = vmatpush1.bf16.msra.mxu0 0
        %1463 = vmatprep.subr.bf16.mxu0 0
        %1464 = vmatpush1.bf16.msra.mxu0 0
        %1465 = vmatprep.subr.bf16.mxu0 0
        %1466 = vmatpush1.bf16.msra.mxu0 0
        %1467 = vmatprep.subr.bf16.mxu0 0
        %1468 = vmatpush1.bf16.msra.mxu0 0
        %1469 = vmatprep.mubr.bf16.mxu0 0
        %1470 = vmatmul.mubr.bf16.gmra.mrb[0].mxu0 %v1268
        %v1471 = vpop.f32.mrb[0].mxu0
        %v1472 = vadd.f32 %v1384, %v1471
        %v1473 = vpop.f32.mrb[0].mxu0
        %v1474 = vpop.f32.mrb[0].mxu0
        %v1475 = vpop.f32.mrb[0].mxu0
        %1476 = vdwg.mxu0
        %v1477 = vld [vmem:[%s3] sm:$0xff]
        %v1478 = vadd.f32 %v1472, %v1477
        %vm1479 = vcmp.gt.bf16.partialorder %v1262, 0
        %v1480 = vsel %vm1479, 65537, 0
        %v1481 = vunpack.c.l.b16 %v1480
        %vm1482 = vcmp.ne.s32.totalorder %v1481, 0
        %v1483 = vsel %vm1482, 0.0, %v1258
        %v1484 = vadd.f32 %v1483, %v1478
        %vm1485 = vcmp.gt.f32.partialorder %v1484, 1.0
        %v1486 = vsel %vm1485, 1, 0
        %v1487 = vcvt.s32.f32 %v1486
        %v1488 = vpack.c.bf16 %v1487, %v1487
        %s1489 = scalar_lea.vmem %s342, 32 [#allocation12]
        %1490 = vst [vmem:[%s1489] sm:$0xff] %v1484
        %s1491 = scalar_lea.vmem %s349, 16 [#allocation13]
        %1492 = vst [vmem:[%s1491] sm:$0xf] %v1488
        %s1493 = scalar_lea.vmem %s302, 20 [#allocation4]
        %v1494 = vld [vmem:[%s1493] sm:$0xf]
        %v1495 = vld [vmem:[#allocation7] sm:$0xf]
        %v1496 = vld [vmem:[#allocation7 + $0x4] sm:$0xf]
        %v1497 = vld [vmem:[#allocation7 + $0x8] sm:$0xf]
        %v1498 = vld [vmem:[#allocation7 + $0xc] sm:$0xf]
        %v1499 = vld [vmem:[#allocation7 + $0x10] sm:$0xf]
        %v1500 = vld [vmem:[#allocation7 + $0x14] sm:$0xf]
        %v1501 = vld [vmem:[#allocation7 + $0x18] sm:$0xf]
        %v1502 = vld [vmem:[#allocation7 + $0x1c] sm:$0xf]
        %v1503 = vld [vmem:[#allocation7 + $0x20] sm:$0xf]
        %v1504 = vld [vmem:[#allocation7 + $0x24] sm:$0xf]
        %v1505 = vld [vmem:[#allocation7 + $0x28] sm:$0xf]
        %v1506 = vld [vmem:[#allocation7 + $0x2c] sm:$0xf]
        %v1507 = vld [vmem:[#allocation7 + $0x30] sm:$0xf]
        %v1508 = vld [vmem:[#allocation7 + $0x34] sm:$0xf]
        %v1509 = vld [vmem:[#allocation7 + $0x38] sm:$0xf]
        %v1510 = vld [vmem:[#allocation7 + $0x3c] sm:$0xf]
        %v1511 = vld [vmem:[#allocation9] sm:$0xf]
        %v1512 = vld [vmem:[#allocation9 + $0x4] sm:$0xf]
        %v1513 = vld [vmem:[#allocation9 + $0x8] sm:$0xf]
        %v1514 = vld [vmem:[#allocation9 + $0xc] sm:$0xf]
        %v1515 = vld [vmem:[#allocation9 + $0x10] sm:$0xf]
        %v1516 = vld [vmem:[#allocation9 + $0x14] sm:$0xf]
        %v1517 = vld [vmem:[#allocation9 + $0x18] sm:$0xf]
        %v1518 = vld [vmem:[#allocation9 + $0x1c] sm:$0xf]
        %v1519 = vld [vmem:[#allocation9 + $0x20] sm:$0xf]
        %v1520 = vld [vmem:[#allocation9 + $0x24] sm:$0xf]
        %v1521 = vld [vmem:[#allocation9 + $0x28] sm:$0xf]
        %v1522 = vld [vmem:[#allocation9 + $0x2c] sm:$0xf]
        %v1523 = vld [vmem:[#allocation9 + $0x30] sm:$0xf]
        %v1524 = vld [vmem:[#allocation9 + $0x34] sm:$0xf]
        %v1525 = vld [vmem:[#allocation9 + $0x38] sm:$0xf]
        %v1526 = vld [vmem:[#allocation9 + $0x3c] sm:$0xf]
        %v1543 = vunpack.c.l.b16 %v1511
        %v1544 = vunpack.c.l.b16 %v1512
        %v1545 = vunpack.c.l.b16 %v1513
        %v1546 = vunpack.c.l.b16 %v1514
        %v1547 = vunpack.c.l.b16 %v1515
        %v1548 = vunpack.c.l.b16 %v1516
        %v1549 = vunpack.c.l.b16 %v1517
        %v1550 = vunpack.c.l.b16 %v1518
        %v1551 = vunpack.c.l.b16 %v1519
        %v1552 = vunpack.c.l.b16 %v1520
        %v1553 = vunpack.c.l.b16 %v1521
        %v1554 = vunpack.c.l.b16 %v1522
        %v1555 = vunpack.c.l.b16 %v1523
        %v1556 = vunpack.c.l.b16 %v1524
        %v1557 = vunpack.c.l.b16 %v1525
        %v1558 = vunpack.c.l.b16 %v1526
        %v1559 = vpack.c.b16 %v1544, %v1543
        %v1560 = vpack.c.b16 %v1546, %v1545
        %v1561 = vpack.c.b16 %v1548, %v1547
        %v1562 = vpack.c.b16 %v1550, %v1549
        %v1563 = vpack.c.b16 %v1552, %v1551
        %v1564 = vpack.c.b16 %v1554, %v1553
        %v1565 = vpack.c.b16 %v1556, %v1555
        %v1566 = vpack.c.b16 %v1558, %v1557
        %1575 = vmatprep.subr.bf16.mxu0 0
        %1576 = vmatpush1.bf16.msra.mxu0 %v1559
        %1577 = vmatprep.subr.bf16.mxu0 0
        %1578 = vmatpush1.bf16.msra.mxu0 %v1560
        %1579 = vmatprep.subr.bf16.mxu0 0
        %1580 = vmatpush1.bf16.msra.mxu0 %v1561
        %1581 = vmatprep.subr.bf16.mxu0 0
        %1582 = vmatpush1.bf16.msra.mxu0 %v1562
        %1583 = vmatprep.subr.bf16.mxu0 0
        %1584 = vmatpush1.bf16.msra.mxu0 %v1563
        %1585 = vmatprep.subr.bf16.mxu0 0
        %1586 = vmatpush1.bf16.msra.mxu0 %v1564
        %1587 = vmatprep.subr.bf16.mxu0 0
        %1588 = vmatpush1.bf16.msra.mxu0 %v1565
        %1589 = vmatprep.subr.bf16.mxu0 0
        %1590 = vmatpush1.bf16.msra.mxu0 %v1566
        %1591 = vmatprep.subr.bf16.mxu0 0
        %1592 = vmatpush1.bf16.msra.mxu0 0
        %1593 = vmatprep.subr.bf16.mxu0 0
        %1594 = vmatpush1.bf16.msra.mxu0 0
        %1595 = vmatprep.subr.bf16.mxu0 0
        %1596 = vmatpush1.bf16.msra.mxu0 0
        %1597 = vmatprep.subr.bf16.mxu0 0
        %1598 = vmatpush1.bf16.msra.mxu0 0
        %1599 = vmatprep.subr.bf16.mxu0 0
        %1600 = vmatpush1.bf16.msra.mxu0 0
        %1601 = vmatprep.subr.bf16.mxu0 0
        %1602 = vmatpush1.bf16.msra.mxu0 0
        %1603 = vmatprep.subr.bf16.mxu0 0
        %1604 = vmatpush1.bf16.msra.mxu0 0
        %1605 = vmatprep.subr.bf16.mxu0 0
        %1606 = vmatpush1.bf16.msra.mxu0 0
        %1607 = vmatprep.mubr.bf16.mxu0 0
        %1608 = vmatmul.mubr.bf16.gmra.mrb[0].mxu0 %v1488
        %v1609 = vpop.f32.mrb[0].mxu0
        %v1610 = vadd.f32 0.0, %v1609
        %v1611 = vpop.f32.mrb[0].mxu0
        %v1612 = vpop.f32.mrb[0].mxu0
        %v1613 = vpop.f32.mrb[0].mxu0
        %1614 = vdwg.mxu0
        %v1631 = vunpack.c.l.b16 %v1495
        %v1632 = vunpack.c.l.b16 %v1496
        %v1633 = vunpack.c.l.b16 %v1497
        %v1634 = vunpack.c.l.b16 %v1498
        %v1635 = vunpack.c.l.b16 %v1499
        %v1636 = vunpack.c.l.b16 %v1500
        %v1637 = vunpack.c.l.b16 %v1501
        %v1638 = vunpack.c.l.b16 %v1502
        %v1639 = vunpack.c.l.b16 %v1503
        %v1640 = vunpack.c.l.b16 %v1504
        %v1641 = vunpack.c.l.b16 %v1505
        %v1642 = vunpack.c.l.b16 %v1506
        %v1643 = vunpack.c.l.b16 %v1507
        %v1644 = vunpack.c.l.b16 %v1508
        %v1645 = vunpack.c.l.b16 %v1509
        %v1646 = vunpack.c.l.b16 %v1510
        %v1647 = vpack.c.b16 %v1632, %v1631
        %v1648 = vpack.c.b16 %v1634, %v1633
        %v1649 = vpack.c.b16 %v1636, %v1635
        %v1650 = vpack.c.b16 %v1638, %v1637
        %v1651 = vpack.c.b16 %v1640, %v1639
        %v1652 = vpack.c.b16 %v1642, %v1641
        %v1653 = vpack.c.b16 %v1644, %v1643
        %v1654 = vpack.c.b16 %v1646, %v1645
        %1663 = vmatprep.subr.bf16.mxu0 0
        %1664 = vmatpush1.bf16.msra.mxu0 %v1647
        %1665 = vmatprep.subr.bf16.mxu0 0
        %1666 = vmatpush1.bf16.msra.mxu0 %v1648
        %1667 = vmatprep.subr.bf16.mxu0 0
        %1668 = vmatpush1.bf16.msra.mxu0 %v1649
        %1669 = vmatprep.subr.bf16.mxu0 0
        %1670 = vmatpush1.bf16.msra.mxu0 %v1650
        %1671 = vmatprep.subr.bf16.mxu0 0
        %1672 = vmatpush1.bf16.msra.mxu0 %v1651
        %1673 = vmatprep.subr.bf16.mxu0 0
        %1674 = vmatpush1.bf16.msra.mxu0 %v1652
        %1675 = vmatprep.subr.bf16.mxu0 0
        %1676 = vmatpush1.bf16.msra.mxu0 %v1653
        %1677 = vmatprep.subr.bf16.mxu0 0
        %1678 = vmatpush1.bf16.msra.mxu0 %v1654
        %1679 = vmatprep.subr.bf16.mxu0 0
        %1680 = vmatpush1.bf16.msra.mxu0 0
        %1681 = vmatprep.subr.bf16.mxu0 0
        %1682 = vmatpush1.bf16.msra.mxu0 0
        %1683 = vmatprep.subr.bf16.mxu0 0
        %1684 = vmatpush1.bf16.msra.mxu0 0
        %1685 = vmatprep.subr.bf16.mxu0 0
        %1686 = vmatpush1.bf16.msra.mxu0 0
        %1687 = vmatprep.subr.bf16.mxu0 0
        %1688 = vmatpush1.bf16.msra.mxu0 0
        %1689 = vmatprep.subr.bf16.mxu0 0
        %1690 = vmatpush1.bf16.msra.mxu0 0
        %1691 = vmatprep.subr.bf16.mxu0 0
        %1692 = vmatpush1.bf16.msra.mxu0 0
        %1693 = vmatprep.subr.bf16.mxu0 0
        %1694 = vmatpush1.bf16.msra.mxu0 0
        %1695 = vmatprep.mubr.bf16.mxu0 0
        %1696 = vmatmul.mubr.bf16.gmra.mrb[0].mxu0 %v1494
        %v1697 = vpop.f32.mrb[0].mxu0
        %v1698 = vadd.f32 %v1610, %v1697
        %v1699 = vpop.f32.mrb[0].mxu0
        %v1700 = vpop.f32.mrb[0].mxu0
        %v1701 = vpop.f32.mrb[0].mxu0
        %1702 = vdwg.mxu0
        %v1703 = vld [vmem:[%s3] sm:$0xff]
        %v1704 = vadd.f32 %v1698, %v1703
        %vm1705 = vcmp.gt.bf16.partialorder %v1488, 0
        %v1706 = vsel %vm1705, 65537, 0
        %v1707 = vunpack.c.l.b16 %v1706
        %vm1708 = vcmp.ne.s32.totalorder %v1707, 0
        %v1709 = vsel %vm1708, 0.0, %v1484
        %v1710 = vadd.f32 %v1709, %v1704
        %vm1711 = vcmp.gt.f32.partialorder %v1710, 1.0
        %v1712 = vsel %vm1711, 1, 0
        %v1713 = vcvt.s32.f32 %v1712
        %v1714 = vpack.c.bf16 %v1713, %v1713
        %s1715 = scalar_lea.vmem %s342, 40 [#allocation12]
        %1716 = vst [vmem:[%s1715] sm:$0xff] %v1710
        %s1717 = scalar_lea.vmem %s349, 20 [#allocation13]
        %1718 = vst [vmem:[%s1717] sm:$0xf] %v1714
        %s1719 = scalar_lea.vmem %s302, 24 [#allocation4]
        %v1720 = vld [vmem:[%s1719] sm:$0xf]
        %v1721 = vld [vmem:[#allocation7] sm:$0xf]
        %v1722 = vld [vmem:[#allocation7 + $0x4] sm:$0xf]
        %v1723 = vld [vmem:[#allocation7 + $0x8] sm:$0xf]
        %v1724 = vld [vmem:[#allocation7 + $0xc] sm:$0xf]
        %v1725 = vld [vmem:[#allocation7 + $0x10] sm:$0xf]
        %v1726 = vld [vmem:[#allocation7 + $0x14] sm:$0xf]
        %v1727 = vld [vmem:[#allocation7 + $0x18] sm:$0xf]
        %v1728 = vld [vmem:[#allocation7 + $0x1c] sm:$0xf]
        %v1729 = vld [vmem:[#allocation7 + $0x20] sm:$0xf]
        %v1730 = vld [vmem:[#allocation7 + $0x24] sm:$0xf]
        %v1731 = vld [vmem:[#allocation7 + $0x28] sm:$0xf]
        %v1732 = vld [vmem:[#allocation7 + $0x2c] sm:$0xf]
        %v1733 = vld [vmem:[#allocation7 + $0x30] sm:$0xf]
        %v1734 = vld [vmem:[#allocation7 + $0x34] sm:$0xf]
        %v1735 = vld [vmem:[#allocation7 + $0x38] sm:$0xf]
        %v1736 = vld [vmem:[#allocation7 + $0x3c] sm:$0xf]
        %v1737 = vld [vmem:[#allocation9] sm:$0xf]
        %v1738 = vld [vmem:[#allocation9 + $0x4] sm:$0xf]
        %v1739 = vld [vmem:[#allocation9 + $0x8] sm:$0xf]
        %v1740 = vld [vmem:[#allocation9 + $0xc] sm:$0xf]
        %v1741 = vld [vmem:[#allocation9 + $0x10] sm:$0xf]
        %v1742 = vld [vmem:[#allocation9 + $0x14] sm:$0xf]
        %v1743 = vld [vmem:[#allocation9 + $0x18] sm:$0xf]
        %v1744 = vld [vmem:[#allocation9 + $0x1c] sm:$0xf]
        %v1745 = vld [vmem:[#allocation9 + $0x20] sm:$0xf]
        %v1746 = vld [vmem:[#allocation9 + $0x24] sm:$0xf]
        %v1747 = vld [vmem:[#allocation9 + $0x28] sm:$0xf]
        %v1748 = vld [vmem:[#allocation9 + $0x2c] sm:$0xf]
        %v1749 = vld [vmem:[#allocation9 + $0x30] sm:$0xf]
        %v1750 = vld [vmem:[#allocation9 + $0x34] sm:$0xf]
        %v1751 = vld [vmem:[#allocation9 + $0x38] sm:$0xf]
        %v1752 = vld [vmem:[#allocation9 + $0x3c] sm:$0xf]
        %v1769 = vunpack.c.l.b16 %v1737
        %v1770 = vunpack.c.l.b16 %v1738
        %v1771 = vunpack.c.l.b16 %v1739
        %v1772 = vunpack.c.l.b16 %v1740
        %v1773 = vunpack.c.l.b16 %v1741
        %v1774 = vunpack.c.l.b16 %v1742
        %v1775 = vunpack.c.l.b16 %v1743
        %v1776 = vunpack.c.l.b16 %v1744
        %v1777 = vunpack.c.l.b16 %v1745
        %v1778 = vunpack.c.l.b16 %v1746
        %v1779 = vunpack.c.l.b16 %v1747
        %v1780 = vunpack.c.l.b16 %v1748
        %v1781 = vunpack.c.l.b16 %v1749
        %v1782 = vunpack.c.l.b16 %v1750
        %v1783 = vunpack.c.l.b16 %v1751
        %v1784 = vunpack.c.l.b16 %v1752
        %v1785 = vpack.c.b16 %v1770, %v1769
        %v1786 = vpack.c.b16 %v1772, %v1771
        %v1787 = vpack.c.b16 %v1774, %v1773
        %v1788 = vpack.c.b16 %v1776, %v1775
        %v1789 = vpack.c.b16 %v1778, %v1777
        %v1790 = vpack.c.b16 %v1780, %v1779
        %v1791 = vpack.c.b16 %v1782, %v1781
        %v1792 = vpack.c.b16 %v1784, %v1783
        %1801 = vmatprep.subr.bf16.mxu0 0
        %1802 = vmatpush1.bf16.msra.mxu0 %v1785
        %1803 = vmatprep.subr.bf16.mxu0 0
        %1804 = vmatpush1.bf16.msra.mxu0 %v1786
        %1805 = vmatprep.subr.bf16.mxu0 0
        %1806 = vmatpush1.bf16.msra.mxu0 %v1787
        %1807 = vmatprep.subr.bf16.mxu0 0
        %1808 = vmatpush1.bf16.msra.mxu0 %v1788
        %1809 = vmatprep.subr.bf16.mxu0 0
        %1810 = vmatpush1.bf16.msra.mxu0 %v1789
        %1811 = vmatprep.subr.bf16.mxu0 0
        %1812 = vmatpush1.bf16.msra.mxu0 %v1790
        %1813 = vmatprep.subr.bf16.mxu0 0
        %1814 = vmatpush1.bf16.msra.mxu0 %v1791
        %1815 = vmatprep.subr.bf16.mxu0 0
        %1816 = vmatpush1.bf16.msra.mxu0 %v1792
        %1817 = vmatprep.subr.bf16.mxu0 0
        %1818 = vmatpush1.bf16.msra.mxu0 0
        %1819 = vmatprep.subr.bf16.mxu0 0
        %1820 = vmatpush1.bf16.msra.mxu0 0
        %1821 = vmatprep.subr.bf16.mxu0 0
        %1822 = vmatpush1.bf16.msra.mxu0 0
        %1823 = vmatprep.subr.bf16.mxu0 0
        %1824 = vmatpush1.bf16.msra.mxu0 0
        %1825 = vmatprep.subr.bf16.mxu0 0
        %1826 = vmatpush1.bf16.msra.mxu0 0
        %1827 = vmatprep.subr.bf16.mxu0 0
        %1828 = vmatpush1.bf16.msra.mxu0 0
        %1829 = vmatprep.subr.bf16.mxu0 0
        %1830 = vmatpush1.bf16.msra.mxu0 0
        %1831 = vmatprep.subr.bf16.mxu0 0
        %1832 = vmatpush1.bf16.msra.mxu0 0
        %1833 = vmatprep.mubr.bf16.mxu0 0
        %1834 = vmatmul.mubr.bf16.gmra.mrb[0].mxu0 %v1714
        %v1835 = vpop.f32.mrb[0].mxu0
        %v1836 = vadd.f32 0.0, %v1835
        %v1837 = vpop.f32.mrb[0].mxu0
        %v1838 = vpop.f32.mrb[0].mxu0
        %v1839 = vpop.f32.mrb[0].mxu0
        %1840 = vdwg.mxu0
        %v1857 = vunpack.c.l.b16 %v1721
        %v1858 = vunpack.c.l.b16 %v1722
        %v1859 = vunpack.c.l.b16 %v1723
        %v1860 = vunpack.c.l.b16 %v1724
        %v1861 = vunpack.c.l.b16 %v1725
        %v1862 = vunpack.c.l.b16 %v1726
        %v1863 = vunpack.c.l.b16 %v1727
        %v1864 = vunpack.c.l.b16 %v1728
        %v1865 = vunpack.c.l.b16 %v1729
        %v1866 = vunpack.c.l.b16 %v1730
        %v1867 = vunpack.c.l.b16 %v1731
        %v1868 = vunpack.c.l.b16 %v1732
        %v1869 = vunpack.c.l.b16 %v1733
        %v1870 = vunpack.c.l.b16 %v1734
        %v1871 = vunpack.c.l.b16 %v1735
        %v1872 = vunpack.c.l.b16 %v1736
        %v1873 = vpack.c.b16 %v1858, %v1857
        %v1874 = vpack.c.b16 %v1860, %v1859
        %v1875 = vpack.c.b16 %v1862, %v1861
        %v1876 = vpack.c.b16 %v1864, %v1863
        %v1877 = vpack.c.b16 %v1866, %v1865
        %v1878 = vpack.c.b16 %v1868, %v1867
        %v1879 = vpack.c.b16 %v1870, %v1869
        %v1880 = vpack.c.b16 %v1872, %v1871
        %1889 = vmatprep.subr.bf16.mxu0 0
        %1890 = vmatpush1.bf16.msra.mxu0 %v1873
        %1891 = vmatprep.subr.bf16.mxu0 0
        %1892 = vmatpush1.bf16.msra.mxu0 %v1874
        %1893 = vmatprep.subr.bf16.mxu0 0
        %1894 = vmatpush1.bf16.msra.mxu0 %v1875
        %1895 = vmatprep.subr.bf16.mxu0 0
        %1896 = vmatpush1.bf16.msra.mxu0 %v1876
        %1897 = vmatprep.subr.bf16.mxu0 0
        %1898 = vmatpush1.bf16.msra.mxu0 %v1877
        %1899 = vmatprep.subr.bf16.mxu0 0
        %1900 = vmatpush1.bf16.msra.mxu0 %v1878
        %1901 = vmatprep.subr.bf16.mxu0 0
        %1902 = vmatpush1.bf16.msra.mxu0 %v1879
        %1903 = vmatprep.subr.bf16.mxu0 0
        %1904 = vmatpush1.bf16.msra.mxu0 %v1880
        %1905 = vmatprep.subr.bf16.mxu0 0
        %1906 = vmatpush1.bf16.msra.mxu0 0
        %1907 = vmatprep.subr.bf16.mxu0 0
        %1908 = vmatpush1.bf16.msra.mxu0 0
        %1909 = vmatprep.subr.bf16.mxu0 0
        %1910 = vmatpush1.bf16.msra.mxu0 0
        %1911 = vmatprep.subr.bf16.mxu0 0
        %1912 = vmatpush1.bf16.msra.mxu0 0
        %1913 = vmatprep.subr.bf16.mxu0 0
        %1914 = vmatpush1.bf16.msra.mxu0 0
        %1915 = vmatprep.subr.bf16.mxu0 0
        %1916 = vmatpush1.bf16.msra.mxu0 0
        %1917 = vmatprep.subr.bf16.mxu0 0
        %1918 = vmatpush1.bf16.msra.mxu0 0
        %1919 = vmatprep.subr.bf16.mxu0 0
        %1920 = vmatpush1.bf16.msra.mxu0 0
        %1921 = vmatprep.mubr.bf16.mxu0 0
        %1922 = vmatmul.mubr.bf16.gmra.mrb[0].mxu0 %v1720
        %v1923 = vpop.f32.mrb[0].mxu0
        %v1924 = vadd.f32 %v1836, %v1923
        %v1925 = vpop.f32.mrb[0].mxu0
        %v1926 = vpop.f32.mrb[0].mxu0
        %v1927 = vpop.f32.mrb[0].mxu0
        %1928 = vdwg.mxu0
        %v1929 = vld [vmem:[%s3] sm:$0xff]
        %v1930 = vadd.f32 %v1924, %v1929
        %vm1931 = vcmp.gt.bf16.partialorder %v1714, 0
        %v1932 = vsel %vm1931, 65537, 0
        %v1933 = vunpack.c.l.b16 %v1932
        %vm1934 = vcmp.ne.s32.totalorder %v1933, 0
        %v1935 = vsel %vm1934, 0.0, %v1710
        %v1936 = vadd.f32 %v1935, %v1930
        %vm1937 = vcmp.gt.f32.partialorder %v1936, 1.0
        %v1938 = vsel %vm1937, 1, 0
        %v1939 = vcvt.s32.f32 %v1938
        %v1940 = vpack.c.bf16 %v1939, %v1939
        %s1941 = scalar_lea.vmem %s342, 48 [#allocation12]
        %1942 = vst [vmem:[%s1941] sm:$0xff] %v1936
        %s1943 = scalar_lea.vmem %s349, 24 [#allocation13]
        %1944 = vst [vmem:[%s1943] sm:$0xf] %v1940
        %s1945 = scalar_lea.vmem %s302, 28 [#allocation4]
        %v1946 = vld [vmem:[%s1945] sm:$0xf]
        %v1947 = vld [vmem:[#allocation7] sm:$0xf]
        %v1948 = vld [vmem:[#allocation7 + $0x4] sm:$0xf]
        %v1949 = vld [vmem:[#allocation7 + $0x8] sm:$0xf]
        %v1950 = vld [vmem:[#allocation7 + $0xc] sm:$0xf]
        %v1951 = vld [vmem:[#allocation7 + $0x10] sm:$0xf]
        %v1952 = vld [vmem:[#allocation7 + $0x14] sm:$0xf]
        %v1953 = vld [vmem:[#allocation7 + $0x18] sm:$0xf]
        %v1954 = vld [vmem:[#allocation7 + $0x1c] sm:$0xf]
        %v1955 = vld [vmem:[#allocation7 + $0x20] sm:$0xf]
        %v1956 = vld [vmem:[#allocation7 + $0x24] sm:$0xf]
        %v1957 = vld [vmem:[#allocation7 + $0x28] sm:$0xf]
        %v1958 = vld [vmem:[#allocation7 + $0x2c] sm:$0xf]
        %v1959 = vld [vmem:[#allocation7 + $0x30] sm:$0xf]
        %v1960 = vld [vmem:[#allocation7 + $0x34] sm:$0xf]
        %v1961 = vld [vmem:[#allocation7 + $0x38] sm:$0xf]
        %v1962 = vld [vmem:[#allocation7 + $0x3c] sm:$0xf]
        %v1963 = vld [vmem:[#allocation9] sm:$0xf]
        %v1964 = vld [vmem:[#allocation9 + $0x4] sm:$0xf]
        %v1965 = vld [vmem:[#allocation9 + $0x8] sm:$0xf]
        %v1966 = vld [vmem:[#allocation9 + $0xc] sm:$0xf]
        %v1967 = vld [vmem:[#allocation9 + $0x10] sm:$0xf]
        %v1968 = vld [vmem:[#allocation9 + $0x14] sm:$0xf]
        %v1969 = vld [vmem:[#allocation9 + $0x18] sm:$0xf]
        %v1970 = vld [vmem:[#allocation9 + $0x1c] sm:$0xf]
        %v1971 = vld [vmem:[#allocation9 + $0x20] sm:$0xf]
        %v1972 = vld [vmem:[#allocation9 + $0x24] sm:$0xf]
        %v1973 = vld [vmem:[#allocation9 + $0x28] sm:$0xf]
        %v1974 = vld [vmem:[#allocation9 + $0x2c] sm:$0xf]
        %v1975 = vld [vmem:[#allocation9 + $0x30] sm:$0xf]
        %v1976 = vld [vmem:[#allocation9 + $0x34] sm:$0xf]
        %v1977 = vld [vmem:[#allocation9 + $0x38] sm:$0xf]
        %v1978 = vld [vmem:[#allocation9 + $0x3c] sm:$0xf]
        %v1995 = vunpack.c.l.b16 %v1963
        %v1996 = vunpack.c.l.b16 %v1964
        %v1997 = vunpack.c.l.b16 %v1965
        %v1998 = vunpack.c.l.b16 %v1966
        %v1999 = vunpack.c.l.b16 %v1967
        %v2000 = vunpack.c.l.b16 %v1968
        %v2001 = vunpack.c.l.b16 %v1969
        %v2002 = vunpack.c.l.b16 %v1970
        %v2003 = vunpack.c.l.b16 %v1971
        %v2004 = vunpack.c.l.b16 %v1972
        %v2005 = vunpack.c.l.b16 %v1973
        %v2006 = vunpack.c.l.b16 %v1974
        %v2007 = vunpack.c.l.b16 %v1975
        %v2008 = vunpack.c.l.b16 %v1976
        %v2009 = vunpack.c.l.b16 %v1977
        %v2010 = vunpack.c.l.b16 %v1978
        %v2011 = vpack.c.b16 %v1996, %v1995
        %v2012 = vpack.c.b16 %v1998, %v1997
        %v2013 = vpack.c.b16 %v2000, %v1999
        %v2014 = vpack.c.b16 %v2002, %v2001
        %v2015 = vpack.c.b16 %v2004, %v2003
        %v2016 = vpack.c.b16 %v2006, %v2005
        %v2017 = vpack.c.b16 %v2008, %v2007
        %v2018 = vpack.c.b16 %v2010, %v2009
        %2027 = vmatprep.subr.bf16.mxu0 0
        %2028 = vmatpush1.bf16.msra.mxu0 %v2011
        %2029 = vmatprep.subr.bf16.mxu0 0
        %2030 = vmatpush1.bf16.msra.mxu0 %v2012
        %2031 = vmatprep.subr.bf16.mxu0 0
        %2032 = vmatpush1.bf16.msra.mxu0 %v2013
        %2033 = vmatprep.subr.bf16.mxu0 0
        %2034 = vmatpush1.bf16.msra.mxu0 %v2014
        %2035 = vmatprep.subr.bf16.mxu0 0
        %2036 = vmatpush1.bf16.msra.mxu0 %v2015
        %2037 = vmatprep.subr.bf16.mxu0 0
        %2038 = vmatpush1.bf16.msra.mxu0 %v2016
        %2039 = vmatprep.subr.bf16.mxu0 0
        %2040 = vmatpush1.bf16.msra.mxu0 %v2017
        %2041 = vmatprep.subr.bf16.mxu0 0
        %2042 = vmatpush1.bf16.msra.mxu0 %v2018
        %2043 = vmatprep.subr.bf16.mxu0 0
        %2044 = vmatpush1.bf16.msra.mxu0 0
        %2045 = vmatprep.subr.bf16.mxu0 0
        %2046 = vmatpush1.bf16.msra.mxu0 0
        %2047 = vmatprep.subr.bf16.mxu0 0
        %2048 = vmatpush1.bf16.msra.mxu0 0
        %2049 = vmatprep.subr.bf16.mxu0 0
        %2050 = vmatpush1.bf16.msra.mxu0 0
        %2051 = vmatprep.subr.bf16.mxu0 0
        %2052 = vmatpush1.bf16.msra.mxu0 0
        %2053 = vmatprep.subr.bf16.mxu0 0
        %2054 = vmatpush1.bf16.msra.mxu0 0
        %2055 = vmatprep.subr.bf16.mxu0 0
        %2056 = vmatpush1.bf16.msra.mxu0 0
        %2057 = vmatprep.subr.bf16.mxu0 0
        %2058 = vmatpush1.bf16.msra.mxu0 0
        %2059 = vmatprep.mubr.bf16.mxu0 0
        %2060 = vmatmul.mubr.bf16.gmra.mrb[0].mxu0 %v1940
        %v2061 = vpop.f32.mrb[0].mxu0
        %v2062 = vadd.f32 0.0, %v2061
        %v2063 = vpop.f32.mrb[0].mxu0
        %v2064 = vpop.f32.mrb[0].mxu0
        %v2065 = vpop.f32.mrb[0].mxu0
        %2066 = vdwg.mxu0
        %v2083 = vunpack.c.l.b16 %v1947
        %v2084 = vunpack.c.l.b16 %v1948
        %v2085 = vunpack.c.l.b16 %v1949
        %v2086 = vunpack.c.l.b16 %v1950
        %v2087 = vunpack.c.l.b16 %v1951
        %v2088 = vunpack.c.l.b16 %v1952
        %v2089 = vunpack.c.l.b16 %v1953
        %v2090 = vunpack.c.l.b16 %v1954
        %v2091 = vunpack.c.l.b16 %v1955
        %v2092 = vunpack.c.l.b16 %v1956
        %v2093 = vunpack.c.l.b16 %v1957
        %v2094 = vunpack.c.l.b16 %v1958
        %v2095 = vunpack.c.l.b16 %v1959
        %v2096 = vunpack.c.l.b16 %v1960
        %v2097 = vunpack.c.l.b16 %v1961
        %v2098 = vunpack.c.l.b16 %v1962
        %v2099 = vpack.c.b16 %v2084, %v2083
        %v2100 = vpack.c.b16 %v2086, %v2085
        %v2101 = vpack.c.b16 %v2088, %v2087
        %v2102 = vpack.c.b16 %v2090, %v2089
        %v2103 = vpack.c.b16 %v2092, %v2091
        %v2104 = vpack.c.b16 %v2094, %v2093
        %v2105 = vpack.c.b16 %v2096, %v2095
        %v2106 = vpack.c.b16 %v2098, %v2097
        %2115 = vmatprep.subr.bf16.mxu0 0
        %2116 = vmatpush1.bf16.msra.mxu0 %v2099
        %2117 = vmatprep.subr.bf16.mxu0 0
        %2118 = vmatpush1.bf16.msra.mxu0 %v2100
        %2119 = vmatprep.subr.bf16.mxu0 0
        %2120 = vmatpush1.bf16.msra.mxu0 %v2101
        %2121 = vmatprep.subr.bf16.mxu0 0
        %2122 = vmatpush1.bf16.msra.mxu0 %v2102
        %2123 = vmatprep.subr.bf16.mxu0 0
        %2124 = vmatpush1.bf16.msra.mxu0 %v2103
        %2125 = vmatprep.subr.bf16.mxu0 0
        %2126 = vmatpush1.bf16.msra.mxu0 %v2104
        %2127 = vmatprep.subr.bf16.mxu0 0
        %2128 = vmatpush1.bf16.msra.mxu0 %v2105
        %2129 = vmatprep.subr.bf16.mxu0 0
        %2130 = vmatpush1.bf16.msra.mxu0 %v2106
        %2131 = vmatprep.subr.bf16.mxu0 0
        %2132 = vmatpush1.bf16.msra.mxu0 0
        %2133 = vmatprep.subr.bf16.mxu0 0
        %2134 = vmatpush1.bf16.msra.mxu0 0
        %2135 = vmatprep.subr.bf16.mxu0 0
        %2136 = vmatpush1.bf16.msra.mxu0 0
        %2137 = vmatprep.subr.bf16.mxu0 0
        %2138 = vmatpush1.bf16.msra.mxu0 0
        %2139 = vmatprep.subr.bf16.mxu0 0
        %2140 = vmatpush1.bf16.msra.mxu0 0
        %2141 = vmatprep.subr.bf16.mxu0 0
        %2142 = vmatpush1.bf16.msra.mxu0 0
        %2143 = vmatprep.subr.bf16.mxu0 0
        %2144 = vmatpush1.bf16.msra.mxu0 0
        %2145 = vmatprep.subr.bf16.mxu0 0
        %2146 = vmatpush1.bf16.msra.mxu0 0
        %2147 = vmatprep.mubr.bf16.mxu0 0
        %2148 = vmatmul.mubr.bf16.gmra.mrb[0].mxu0 %v1946
        %v2149 = vpop.f32.mrb[0].mxu0
        %v2150 = vadd.f32 %v2062, %v2149
        %v2151 = vpop.f32.mrb[0].mxu0
        %v2152 = vpop.f32.mrb[0].mxu0
        %v2153 = vpop.f32.mrb[0].mxu0
        %2154 = vdwg.mxu0
        %v2155 = vld [vmem:[%s3] sm:$0xff]
        %v2156 = vadd.f32 %v2150, %v2155
        %vm2157 = vcmp.gt.bf16.partialorder %v1940, 0
        %v2158 = vsel %vm2157, 65537, 0
        %v2159 = vunpack.c.l.b16 %v2158
        %vm2160 = vcmp.ne.s32.totalorder %v2159, 0
        %v2161 = vsel %vm2160, 0.0, %v1936
        %v2162 = vadd.f32 %v2161, %v2156
        %vm2163 = vcmp.gt.f32.partialorder %v2162, 1.0
        %v2164 = vsel %vm2163, 1, 0
        %v2165 = vcvt.s32.f32 %v2164
        %v2166 = vpack.c.bf16 %v2165, %v2165
        %s2167 = scalar_lea.vmem %s342, 56 [#allocation12]
        %2168 = vst [vmem:[%s2167] sm:$0xff] %v2162
        %s2169 = scalar_lea.vmem %s349, 28 [#allocation13]
        %2170 = vst [vmem:[%s2169] sm:$0xf] %v2166
        %2171 = vst [vmem:[#allocation2] sm:$0xff] %v2162
        %2172 = vst [vmem:[#allocation3] sm:$0xf] %v2166
        %s2173 = sand.u32 %s169, 1
        %s2174 = scalar_lea.sflag [#allocation6], %s2173
        %s2175 = sand.u32 %s169, 1
        %s2176 = smul.addr %s2175, 64
        %s2177 = scalar_lea.vmem [#allocation12], %s2176
        %s2178 = sand.u32 %s195, 1
        %s2179 = scalar_lea.sflag [#allocation14], %s2178
        %s2180 = sand.u32 %s195, 1
        %s2181 = smul.addr %s2180, 32
        %s2182 = scalar_lea.vmem [#allocation13], %s2181
        // Predicated region
        $region65: #{tpu_custom_call.1} parent=43 // pred_check
          %p2183 = pneg %p179
        $region66: #{tpu_custom_call.1} parent=43 // pred_check_branch
          %2185 = sbr.rel (%p2183) target = $region68
        $region67: #{tpu_custom_call.1} parent=43 // pred_region
          %s2186 = smul.u32 8, %s30
          %s2188 = ssub.s32 1024, 1024
          %2189 = vsyncadd %s2174, %s2188
          %s2190 = smul.addr %s2186, 128
          %s2191 = scalar_lea.hbm %s6, %s2190
          %s2192 = sshll.u32 %s2177, 4
          %s2193 = int_to_ptr.vmem [resolvable:$true] %s2192
          %2198 = dma.vmem_to_hbm [thread:$0]  %s2193, 1024, %s2191, %s2174, 128, 128, 8
        $region68: #{tpu_custom_call.1} parent=43 // pred_fallthru
          _
        // Predicated region
        $region69: #{tpu_custom_call.1} parent=43 // pred_check
          %p2199 = pneg %p205
        $region70: #{tpu_custom_call.1} parent=43 // pred_check_branch
          %2201 = sbr.rel (%p2199) target = $region72
        $region71: #{tpu_custom_call.1} parent=43 // pred_region
          %s2202 = smul.u32 8, %s30
          %s2204 = ssub.s32 512, 512
          %2205 = vsyncadd %s2179, %s2204
          %s2206 = smul.addr %s2202, 64
          %s2207 = scalar_lea.hbm %s7, %s2206
          %s2208 = sshll.u32 %s2182, 4
          %s2209 = int_to_ptr.vmem [resolvable:$true] %s2208
          %2214 = dma.vmem_to_hbm [thread:$0]  %s2209, 512, %s2207, %s2179, 64, 64, 4
        $region72: #{tpu_custom_call.1} parent=43 // pred_fallthru
          _
      $region44: #{tpu_custom_call.1} parent=5 // pred_fallthru
        _
      %p2215 = scmp.le.s32.totalorder 2, %s25
      // Predicated region
      $region73: #{tpu_custom_call.1} parent=5 // pred_check
        %p2216 = pneg %p2215
      $region74: #{tpu_custom_call.1} parent=5 // pred_check_branch
        %2218 = sbr.rel (%p2216) target = $region76
      $region75: #{tpu_custom_call.1} parent=5 // pred_region
        %s2219 = ssub.s32 %s25, 2
        // Predicated region
        $region77: #{tpu_custom_call.1} parent=75 // pred_check
          %p2220 = pneg %p185
        $region78: #{tpu_custom_call.1} parent=75 // pred_check_branch
          %2222 = sbr.rel (%p2220) target = $region80
        $region79: #{tpu_custom_call.1} parent=75 // pred_region
          %s2223 = sand.u32 %s170, 1
          %s2224 = scalar_lea.sflag [#allocation6], %s2223
          %s2225 = sand.u32 %s170, 1
          %s2226 = smul.addr %s2225, 64
          %s2227 = scalar_lea.vmem [#allocation12], %s2226
          %2228 = dma.done %s2224, 1024
        $region80: #{tpu_custom_call.1} parent=75 // pred_fallthru
          _
        // Predicated region
        $region81: #{tpu_custom_call.1} parent=75 // pred_check
          %p2229 = pneg %p211
        $region82: #{tpu_custom_call.1} parent=75 // pred_check_branch
          %2231 = sbr.rel (%p2229) target = $region84
        $region83: #{tpu_custom_call.1} parent=75 // pred_region
          %s2232 = sand.u32 %s196, 1
          %s2233 = scalar_lea.sflag [#allocation14], %s2232
          %s2234 = sand.u32 %s196, 1
          %s2235 = smul.addr %s2234, 32
          %s2236 = scalar_lea.vmem [#allocation13], %s2235
          %2237 = dma.done %s2233, 512
        $region84: #{tpu_custom_call.1} parent=75 // pred_fallthru
          _
      $region76: #{tpu_custom_call.1} parent=5 // pred_fallthru
        _
    $region6: #{tpu_custom_call.1} parent=1 // loop_footer
      %s29 = sadd.s32 1, %s25
    $region7: #{tpu_custom_call.1} parent=1 // loop_footer_branch
      %24 = sbr.rel target = $region3
    $region8: #{tpu_custom_call.1} parent=1 // loop_exit
      _
    %2238 = vsyncpa [#allocation5], 1
    %s2239 = scalar_lea.sflag [#allocation5], 1
    %2240 = vsyncpa %s2239, 1
    %2241 = vsyncpa [#allocation8], 1
    %2242 = vsyncpa [#allocation11], 1
    %2243 = vsyncpa [#allocation6], 1
    %s2244 = scalar_lea.sflag [#allocation6], 1
    %2245 = vsyncpa %s2244, 1
    %2246 = vsyncpa [#allocation14], 1
    %s2247 = scalar_lea.sflag [#allocation14], 1
    %2248 = vsyncpa %s2247, 1

</llo_original>
